<compile_context>
chip_gen: v5e
topology: v5e:2x2
jax: 0.10.0
libtpu: 0.0.40
codegen_flags: <defaults>
</compile_context>

<pallas_src>
import jax
import jax.numpy as jnp
from jax.experimental import pallas as pl
from jax.experimental.pallas import tpu as pltpu

HP = 128   # per-gate lane padding (H -> 128)
OP = 128   # output lane padding (O -> 128) for a lane-dense store


def lstm_kernel(x_ref, wih_ref, whh_ref, b_ref, wfc_ref, bfc_ref, out_ref):
    """Single-layer LSTM over all timesteps + final Linear, fully in one kernel.

    x_ref   : (T*B, I)    time-major flattened input (row t*B + b)
    wih_ref : (I, 4*HP)   input->gate weights, gate order (i, f, g, o), per-gate padded
    whh_ref : (HP, 4*HP)  hidden->gate weights, rows >= H zeroed
    b_ref   : (1, 4*HP)   combined bias (b_ih + b_hh), padded lanes zero
    wfc_ref : (HP, OP)    final linear weight (transposed), zero-padded
    bfc_ref : (1, OP)     final linear bias, zero-padded
    out_ref : (B, OP)     lane-dense output; wrapper slices [:, :O]
    """
    TB = x_ref.shape[0]
    B = out_ref.shape[0]
    T = TB // B

    # Hoisted input projection for ALL timesteps: one matmul + one bias add,
    # instead of a degenerate K=1 MXU push + broadcast inside the serial loop.
    gx = (jnp.dot(x_ref[...], wih_ref[...], preferred_element_type=jnp.float32)
          + b_ref[...])                                          # (T*B, 4*HP)

    whh = whh_ref[...]                                           # load once

    h = jnp.zeros((B, HP), jnp.float32)
    c = jnp.zeros((B, HP), jnp.float32)

    # T is small and static -> full unroll for cross-iteration scheduler visibility.
    for t in range(T):
        g = gx[t * B:(t + 1) * B, :] + jnp.dot(
            h, whh, preferred_element_type=jnp.float32)          # (B, 4*HP)
        i_g = jax.nn.sigmoid(g[:, 0 * HP:1 * HP])
        f_g = jax.nn.sigmoid(g[:, 1 * HP:2 * HP])
        g_g = jnp.tanh(g[:, 2 * HP:3 * HP])
        o_g = jax.nn.sigmoid(g[:, 3 * HP:4 * HP])
        c = f_g * c + i_g * g_g
        h = o_g * jnp.tanh(c)

    # fc on the last hidden state (lane-dense OP-wide result).
    out_ref[...] = (jnp.dot(h, wfc_ref[...], preferred_element_type=jnp.float32)
                    + bfc_ref[...])


def lstm_model_forward(x, params):
    """x: (B, T, I) float32 (PyTorch batch_first). Returns (B, O)."""
    B, T, I = x.shape
    H = params["w_hh"].shape[1]
    O = params["w_fc"].shape[0]
    assert H <= HP and O <= OP

    def pad_gates(w):  # (rows, 4H) -> (rows, 4*HP), each gate slab zero-padded to HP
        return jnp.concatenate(
            [jnp.pad(w[:, k * H:(k + 1) * H], ((0, 0), (0, HP - H)))
             for k in range(4)], axis=1)

    # Time-major flatten so rows [t*B, (t+1)*B) are timestep t.
    x_tm = jnp.transpose(x, (1, 0, 2)).reshape(T * B, I).astype(jnp.float32)

    w_ih = pad_gates(jnp.transpose(params["w_ih"]).astype(jnp.float32))       # (I, 4HP)
    w_hh = pad_gates(jnp.transpose(params["w_hh"]).astype(jnp.float32))       # (H, 4HP)
    w_hh = jnp.pad(w_hh, ((0, HP - H), (0, 0)))                               # (HP, 4HP)
    b = pad_gates((params["b_ih"] + params["b_hh"])
                  .reshape(1, 4 * H).astype(jnp.float32))                     # (1, 4HP)
    w_fc = jnp.pad(jnp.transpose(params["w_fc"]).astype(jnp.float32),
                   ((0, HP - H), (0, OP - O)))                                # (HP, OP)
    b_fc = jnp.pad(params["b_fc"].reshape(1, O).astype(jnp.float32),
                   ((0, 0), (0, OP - O)))                                     # (1, OP)

    vmem = pl.BlockSpec(memory_space=pltpu.MemorySpace.VMEM)
    out_padded = pl.pallas_call(
        lstm_kernel,
        out_shape=jax.ShapeDtypeStruct((B, OP), jnp.float32),
        in_specs=[vmem] * 6,
        out_specs=vmem,
    )(x_tm, w_ih, w_hh, b, w_fc, b_fc)
    return out_padded[:, :O]


def init_params(key, input_size, hidden_size, output_size):
    """Deterministic init mirroring PyTorch shapes (uniform +-1/sqrt(H))."""
    k = 1.0 / jnp.sqrt(hidden_size)
    keys = jax.random.split(key, 6)
    return {
        "w_ih": jax.random.uniform(keys[0], (4 * hidden_size, input_size),
                                   jnp.float32, -k, k),
        "w_hh": jax.random.uniform(keys[1], (4 * hidden_size, hidden_size),
                                   jnp.float32, -k, k),
        "b_ih": jax.random.uniform(keys[2], (4 * hidden_size,),
                                   jnp.float32, -k, k),
        "b_hh": jax.random.uniform(keys[3], (4 * hidden_size,),
                                   jnp.float32, -k, k),
        "w_fc": jax.random.uniform(keys[4], (output_size, hidden_size),
                                   jnp.float32, -k, k),
        "b_fc": jax.random.uniform(keys[5], (output_size,),
                                   jnp.float32, -k, k),
    }


def lstm_model_reference(x, params):
    """Pure-JAX reference of the PyTorch forward (sanity check)."""
    B, T, I = x.shape
    H = params["w_hh"].shape[0] // 4
    w_ih, w_hh = params["w_ih"], params["w_hh"]
    b = params["b_ih"] + params["b_hh"]
    h = jnp.zeros((B, H), jnp.float32)
    c = jnp.zeros((B, H), jnp.float32)
    for t in range(T):
        g = x[:, t, :] @ w_ih.T + h @ w_hh.T + b
        i_g = jax.nn.sigmoid(g[:, 0 * H:1 * H])
        f_g = jax.nn.sigmoid(g[:, 1 * H:2 * H])
        g_g = jnp.tanh(g[:, 2 * H:3 * H])
        o_g = jax.nn.sigmoid(g[:, 3 * H:4 * H])
        c = f_g * c + i_g * g_g
        h = o_g * jnp.tanh(c)
    return h @ params["w_fc"].T + params["b_fc"]


if __name__ == "__main__":
    B, T, I, H, O = 2, 8, 1, 50, 1   # module defaults: input=1, hidden=50, output=1
    key = jax.random.PRNGKey(0)
    kx, kp = jax.random.split(key)
    x = jax.random.normal(kx, (B, T, I), jnp.float32)
    params = init_params(kp, I, H, O)

    out = lstm_model_forward(x, params)
    out = jax.block_until_ready(out)

    ref = lstm_model_reference(x, params)
    assert out.shape == (B, O)
    assert jnp.allclose(out, ref, atol=1e-4, rtol=1e-4)
    print("KERNEL_OK")
</pallas_src>

<mosaic_0001>
module attributes {stable_mosaic.version = 11 : i64} {
  func.func @lstm_kernel(%arg0: memref<16x1xf32, #tpu.memory_space<vmem>>, %arg1: memref<1x512xf32, #tpu.memory_space<vmem>>, %arg2: memref<128x512xf32, #tpu.memory_space<vmem>>, %arg3: memref<1x512xf32, #tpu.memory_space<vmem>>, %arg4: memref<128x128xf32, #tpu.memory_space<vmem>>, %arg5: memref<1x128xf32, #tpu.memory_space<vmem>>, %arg6: memref<2x128xf32, #tpu.memory_space<vmem>>) attributes {dimension_semantics = [], scalar_prefetch = 0 : i64, scratch_operands = 0 : i64, tpu.core_type = #tpu.core_type<tc>} {
    %c0 = arith.constant 0 : index
    %c0_0 = arith.constant 0 : index
    %0 = vector.load %arg0[%c0, %c0_0] : memref<16x1xf32, #tpu.memory_space<vmem>>, vector<16x1xf32>
    %c0_1 = arith.constant 0 : index
    %c0_2 = arith.constant 0 : index
    %1 = vector.load %arg1[%c0_1, %c0_2] : memref<1x512xf32, #tpu.memory_space<vmem>>, vector<1x512xf32>
    %cst = arith.constant dense<0.000000e+00> : vector<16x512xf32>
    %2 = tpu.matmul %0, %1, %cst {dimension_numbers = #tpu.dot_dimension_numbers<[1], [0], [0], [1], [0, 0, 1, 1], [], []>} : vector<16x1xf32>, vector<1x512xf32>, vector<16x512xf32> -> vector<16x512xf32>
    %c0_3 = arith.constant 0 : index
    %c0_4 = arith.constant 0 : index
    %3 = vector.load %arg3[%c0_3, %c0_4] : memref<1x512xf32, #tpu.memory_space<vmem>>, vector<1x512xf32>
    %4 = vector.broadcast %3 : vector<1x512xf32> to vector<16x512xf32>
    %5 = arith.addf %2, %4 : vector<16x512xf32>
    %c0_5 = arith.constant 0 : index
    %c0_6 = arith.constant 0 : index
    %6 = vector.load %arg2[%c0_5, %c0_6] : memref<128x512xf32, #tpu.memory_space<vmem>>, vector<128x512xf32>
    %cst_7 = arith.constant 0.000000e+00 : f32
    %7 = vector.broadcast %cst_7 : f32 to vector<2x128xf32>
    %cst_8 = arith.constant 0.000000e+00 : f32
    %8 = vector.broadcast %cst_8 : f32 to vector<2x128xf32>
    %9 = vector.extract_strided_slice %5 {offsets = [0, 0], sizes = [2, 512], strides = [1, 1]} : vector<16x512xf32> to vector<2x512xf32>
    %cst_9 = arith.constant dense<0.000000e+00> : vector<2x512xf32>
    %10 = tpu.matmul %7, %6, %cst_9 {dimension_numbers = #tpu.dot_dimension_numbers<[1], [0], [0], [1], [0, 0, 1, 1], [], []>} : vector<2x128xf32>, vector<128x512xf32>, vector<2x512xf32> -> vector<2x512xf32>
    %11 = arith.addf %9, %10 : vector<2x512xf32>
    %12 = vector.extract_strided_slice %11 {offsets = [0, 0], sizes = [2, 128], strides = [1, 1]} : vector<2x512xf32> to vector<2x128xf32>
    %13 = arith.negf %12 : vector<2x128xf32>
    %14 = math.exp %13 : vector<2x128xf32>
    %cst_10 = arith.constant 1.000000e+00 : f32
    %15 = vector.broadcast %cst_10 : f32 to vector<2x128xf32>
    %16 = arith.addf %15, %14 : vector<2x128xf32>
    %17 = arith.divf %15, %16 : vector<2x128xf32>
    %18 = vector.extract_strided_slice %11 {offsets = [0, 128], sizes = [2, 128], strides = [1, 1]} : vector<2x512xf32> to vector<2x128xf32>
    %19 = arith.negf %18 : vector<2x128xf32>
    %20 = math.exp %19 : vector<2x128xf32>
    %cst_11 = arith.constant 1.000000e+00 : f32
    %21 = vector.broadcast %cst_11 : f32 to vector<2x128xf32>
    %22 = arith.addf %21, %20 : vector<2x128xf32>
    %23 = arith.divf %21, %22 : vector<2x128xf32>
    %24 = vector.extract_strided_slice %11 {offsets = [0, 256], sizes = [2, 128], strides = [1, 1]} : vector<2x512xf32> to vector<2x128xf32>
    %25 = math.tanh %24 : vector<2x128xf32>
    %26 = vector.extract_strided_slice %11 {offsets = [0, 384], sizes = [2, 128], strides = [1, 1]} : vector<2x512xf32> to vector<2x128xf32>
    %27 = arith.negf %26 : vector<2x128xf32>
    %28 = math.exp %27 : vector<2x128xf32>
    %cst_12 = arith.constant 1.000000e+00 : f32
    %29 = vector.broadcast %cst_12 : f32 to vector<2x128xf32>
    %30 = arith.addf %29, %28 : vector<2x128xf32>
    %31 = arith.divf %29, %30 : vector<2x128xf32>
    %32 = arith.mulf %23, %8 : vector<2x128xf32>
    %33 = arith.mulf %17, %25 : vector<2x128xf32>
    %34 = arith.addf %32, %33 : vector<2x128xf32>
    %35 = math.tanh %34 : vector<2x128xf32>
    %36 = arith.mulf %31, %35 : vector<2x128xf32>
    %37 = vector.extract_strided_slice %5 {offsets = [2, 0], sizes = [2, 512], strides = [1, 1]} : vector<16x512xf32> to vector<2x512xf32>
    %cst_13 = arith.constant dense<0.000000e+00> : vector<2x512xf32>
    %38 = tpu.matmul %36, %6, %cst_13 {dimension_numbers = #tpu.dot_dimension_numbers<[1], [0], [0], [1], [0, 0, 1, 1], [], []>} : vector<2x128xf32>, vector<128x512xf32>, vector<2x512xf32> -> vector<2x512xf32>
    %39 = arith.addf %37, %38 : vector<2x512xf32>
    %40 = vector.extract_strided_slice %39 {offsets = [0, 0], sizes = [2, 128], strides = [1, 1]} : vector<2x512xf32> to vector<2x128xf32>
    %41 = arith.negf %40 : vector<2x128xf32>
    %42 = math.exp %41 : vector<2x128xf32>
    %cst_14 = arith.constant 1.000000e+00 : f32
    %43 = vector.broadcast %cst_14 : f32 to vector<2x128xf32>
    %44 = arith.addf %43, %42 : vector<2x128xf32>
    %45 = arith.divf %43, %44 : vector<2x128xf32>
    %46 = vector.extract_strided_slice %39 {offsets = [0, 128], sizes = [2, 128], strides = [1, 1]} : vector<2x512xf32> to vector<2x128xf32>
    %47 = arith.negf %46 : vector<2x128xf32>
    %48 = math.exp %47 : vector<2x128xf32>
    %cst_15 = arith.constant 1.000000e+00 : f32
    %49 = vector.broadcast %cst_15 : f32 to vector<2x128xf32>
    %50 = arith.addf %49, %48 : vector<2x128xf32>
    %51 = arith.divf %49, %50 : vector<2x128xf32>
    %52 = vector.extract_strided_slice %39 {offsets = [0, 256], sizes = [2, 128], strides = [1, 1]} : vector<2x512xf32> to vector<2x128xf32>
    %53 = math.tanh %52 : vector<2x128xf32>
    %54 = vector.extract_strided_slice %39 {offsets = [0, 384], sizes = [2, 128], strides = [1, 1]} : vector<2x512xf32> to vector<2x128xf32>
    %55 = arith.negf %54 : vector<2x128xf32>
    %56 = math.exp %55 : vector<2x128xf32>
    %cst_16 = arith.constant 1.000000e+00 : f32
    %57 = vector.broadcast %cst_16 : f32 to vector<2x128xf32>
    %58 = arith.addf %57, %56 : vector<2x128xf32>
    %59 = arith.divf %57, %58 : vector<2x128xf32>
    %60 = arith.mulf %51, %34 : vector<2x128xf32>
    %61 = arith.mulf %45, %53 : vector<2x128xf32>
    %62 = arith.addf %60, %61 : vector<2x128xf32>
    %63 = math.tanh %62 : vector<2x128xf32>
    %64 = arith.mulf %59, %63 : vector<2x128xf32>
    %65 = vector.extract_strided_slice %5 {offsets = [4, 0], sizes = [2, 512], strides = [1, 1]} : vector<16x512xf32> to vector<2x512xf32>
    %cst_17 = arith.constant dense<0.000000e+00> : vector<2x512xf32>
    %66 = tpu.matmul %64, %6, %cst_17 {dimension_numbers = #tpu.dot_dimension_numbers<[1], [0], [0], [1], [0, 0, 1, 1], [], []>} : vector<2x128xf32>, vector<128x512xf32>, vector<2x512xf32> -> vector<2x512xf32>
    %67 = arith.addf %65, %66 : vector<2x512xf32>
    %68 = vector.extract_strided_slice %67 {offsets = [0, 0], sizes = [2, 128], strides = [1, 1]} : vector<2x512xf32> to vector<2x128xf32>
    %69 = arith.negf %68 : vector<2x128xf32>
    %70 = math.exp %69 : vector<2x128xf32>
    %cst_18 = arith.constant 1.000000e+00 : f32
    %71 = vector.broadcast %cst_18 : f32 to vector<2x128xf32>
    %72 = arith.addf %71, %70 : vector<2x128xf32>
    %73 = arith.divf %71, %72 : vector<2x128xf32>
    %74 = vector.extract_strided_slice %67 {offsets = [0, 128], sizes = [2, 128], strides = [1, 1]} : vector<2x512xf32> to vector<2x128xf32>
    %75 = arith.negf %74 : vector<2x128xf32>
    %76 = math.exp %75 : vector<2x128xf32>
    %cst_19 = arith.constant 1.000000e+00 : f32
    %77 = vector.broadcast %cst_19 : f32 to vector<2x128xf32>
    %78 = arith.addf %77, %76 : vector<2x128xf32>
    %79 = arith.divf %77, %78 : vector<2x128xf32>
    %80 = vector.extract_strided_slice %67 {offsets = [0, 256], sizes = [2, 128], strides = [1, 1]} : vector<2x512xf32> to vector<2x128xf32>
    %81 = math.tanh %80 : vector<2x128xf32>
    %82 = vector.extract_strided_slice %67 {offsets = [0, 384], sizes = [2, 128], strides = [1, 1]} : vector<2x512xf32> to vector<2x128xf32>
    %83 = arith.negf %82 : vector<2x128xf32>
    %84 = math.exp %83 : vector<2x128xf32>
    %cst_20 = arith.constant 1.000000e+00 : f32
    %85 = vector.broadcast %cst_20 : f32 to vector<2x128xf32>
    %86 = arith.addf %85, %84 : vector<2x128xf32>
    %87 = arith.divf %85, %86 : vector<2x128xf32>
    %88 = arith.mulf %79, %62 : vector<2x128xf32>
    %89 = arith.mulf %73, %81 : vector<2x128xf32>
    %90 = arith.addf %88, %89 : vector<2x128xf32>
    %91 = math.tanh %90 : vector<2x128xf32>
    %92 = arith.mulf %87, %91 : vector<2x128xf32>
    %93 = vector.extract_strided_slice %5 {offsets = [6, 0], sizes = [2, 512], strides = [1, 1]} : vector<16x512xf32> to vector<2x512xf32>
    %cst_21 = arith.constant dense<0.000000e+00> : vector<2x512xf32>
    %94 = tpu.matmul %92, %6, %cst_21 {dimension_numbers = #tpu.dot_dimension_numbers<[1], [0], [0], [1], [0, 0, 1, 1], [], []>} : vector<2x128xf32>, vector<128x512xf32>, vector<2x512xf32> -> vector<2x512xf32>
    %95 = arith.addf %93, %94 : vector<2x512xf32>
    %96 = vector.extract_strided_slice %95 {offsets = [0, 0], sizes = [2, 128], strides = [1, 1]} : vector<2x512xf32> to vector<2x128xf32>
    %97 = arith.negf %96 : vector<2x128xf32>
    %98 = math.exp %97 : vector<2x128xf32>
    %cst_22 = arith.constant 1.000000e+00 : f32
    %99 = vector.broadcast %cst_22 : f32 to vector<2x128xf32>
    %100 = arith.addf %99, %98 : vector<2x128xf32>
    %101 = arith.divf %99, %100 : vector<2x128xf32>
    %102 = vector.extract_strided_slice %95 {offsets = [0, 128], sizes = [2, 128], strides = [1, 1]} : vector<2x512xf32> to vector<2x128xf32>
    %103 = arith.negf %102 : vector<2x128xf32>
    %104 = math.exp %103 : vector<2x128xf32>
    %cst_23 = arith.constant 1.000000e+00 : f32
    %105 = vector.broadcast %cst_23 : f32 to vector<2x128xf32>
    %106 = arith.addf %105, %104 : vector<2x128xf32>
    %107 = arith.divf %105, %106 : vector<2x128xf32>
    %108 = vector.extract_strided_slice %95 {offsets = [0, 256], sizes = [2, 128], strides = [1, 1]} : vector<2x512xf32> to vector<2x128xf32>
    %109 = math.tanh %108 : vector<2x128xf32>
    %110 = vector.extract_strided_slice %95 {offsets = [0, 384], sizes = [2, 128], strides = [1, 1]} : vector<2x512xf32> to vector<2x128xf32>
    %111 = arith.negf %110 : vector<2x128xf32>
    %112 = math.exp %111 : vector<2x128xf32>
    %cst_24 = arith.constant 1.000000e+00 : f32
    %113 = vector.broadcast %cst_24 : f32 to vector<2x128xf32>
    %114 = arith.addf %113, %112 : vector<2x128xf32>
    %115 = arith.divf %113, %114 : vector<2x128xf32>
    %116 = arith.mulf %107, %90 : vector<2x128xf32>
    %117 = arith.mulf %101, %109 : vector<2x128xf32>
    %118 = arith.addf %116, %117 : vector<2x128xf32>
    %119 = math.tanh %118 : vector<2x128xf32>
    %120 = arith.mulf %115, %119 : vector<2x128xf32>
    %121 = vector.extract_strided_slice %5 {offsets = [8, 0], sizes = [2, 512], strides = [1, 1]} : vector<16x512xf32> to vector<2x512xf32>
    %cst_25 = arith.constant dense<0.000000e+00> : vector<2x512xf32>
    %122 = tpu.matmul %120, %6, %cst_25 {dimension_numbers = #tpu.dot_dimension_numbers<[1], [0], [0], [1], [0, 0, 1, 1], [], []>} : vector<2x128xf32>, vector<128x512xf32>, vector<2x512xf32> -> vector<2x512xf32>
    %123 = arith.addf %121, %122 : vector<2x512xf32>
    %124 = vector.extract_strided_slice %123 {offsets = [0, 0], sizes = [2, 128], strides = [1, 1]} : vector<2x512xf32> to vector<2x128xf32>
    %125 = arith.negf %124 : vector<2x128xf32>
    %126 = math.exp %125 : vector<2x128xf32>
    %cst_26 = arith.constant 1.000000e+00 : f32
    %127 = vector.broadcast %cst_26 : f32 to vector<2x128xf32>
    %128 = arith.addf %127, %126 : vector<2x128xf32>
    %129 = arith.divf %127, %128 : vector<2x128xf32>
    %130 = vector.extract_strided_slice %123 {offsets = [0, 128], sizes = [2, 128], strides = [1, 1]} : vector<2x512xf32> to vector<2x128xf32>
    %131 = arith.negf %130 : vector<2x128xf32>
    %132 = math.exp %131 : vector<2x128xf32>
    %cst_27 = arith.constant 1.000000e+00 : f32
    %133 = vector.broadcast %cst_27 : f32 to vector<2x128xf32>
    %134 = arith.addf %133, %132 : vector<2x128xf32>
    %135 = arith.divf %133, %134 : vector<2x128xf32>
    %136 = vector.extract_strided_slice %123 {offsets = [0, 256], sizes = [2, 128], strides = [1, 1]} : vector<2x512xf32> to vector<2x128xf32>
    %137 = math.tanh %136 : vector<2x128xf32>
    %138 = vector.extract_strided_slice %123 {offsets = [0, 384], sizes = [2, 128], strides = [1, 1]} : vector<2x512xf32> to vector<2x128xf32>
    %139 = arith.negf %138 : vector<2x128xf32>
    %140 = math.exp %139 : vector<2x128xf32>
    %cst_28 = arith.constant 1.000000e+00 : f32
    %141 = vector.broadcast %cst_28 : f32 to vector<2x128xf32>
    %142 = arith.addf %141, %140 : vector<2x128xf32>
    %143 = arith.divf %141, %142 : vector<2x128xf32>
    %144 = arith.mulf %135, %118 : vector<2x128xf32>
    %145 = arith.mulf %129, %137 : vector<2x128xf32>
    %146 = arith.addf %144, %145 : vector<2x128xf32>
    %147 = math.tanh %146 : vector<2x128xf32>
    %148 = arith.mulf %143, %147 : vector<2x128xf32>
    %149 = vector.extract_strided_slice %5 {offsets = [10, 0], sizes = [2, 512], strides = [1, 1]} : vector<16x512xf32> to vector<2x512xf32>
    %cst_29 = arith.constant dense<0.000000e+00> : vector<2x512xf32>
    %150 = tpu.matmul %148, %6, %cst_29 {dimension_numbers = #tpu.dot_dimension_numbers<[1], [0], [0], [1], [0, 0, 1, 1], [], []>} : vector<2x128xf32>, vector<128x512xf32>, vector<2x512xf32> -> vector<2x512xf32>
    %151 = arith.addf %149, %150 : vector<2x512xf32>
    %152 = vector.extract_strided_slice %151 {offsets = [0, 0], sizes = [2, 128], strides = [1, 1]} : vector<2x512xf32> to vector<2x128xf32>
    %153 = arith.negf %152 : vector<2x128xf32>
    %154 = math.exp %153 : vector<2x128xf32>
    %cst_30 = arith.constant 1.000000e+00 : f32
    %155 = vector.broadcast %cst_30 : f32 to vector<2x128xf32>
    %156 = arith.addf %155, %154 : vector<2x128xf32>
    %157 = arith.divf %155, %156 : vector<2x128xf32>
    %158 = vector.extract_strided_slice %151 {offsets = [0, 128], sizes = [2, 128], strides = [1, 1]} : vector<2x512xf32> to vector<2x128xf32>
    %159 = arith.negf %158 : vector<2x128xf32>
    %160 = math.exp %159 : vector<2x128xf32>
    %cst_31 = arith.constant 1.000000e+00 : f32
    %161 = vector.broadcast %cst_31 : f32 to vector<2x128xf32>
    %162 = arith.addf %161, %160 : vector<2x128xf32>
    %163 = arith.divf %161, %162 : vector<2x128xf32>
    %164 = vector.extract_strided_slice %151 {offsets = [0, 256], sizes = [2, 128], strides = [1, 1]} : vector<2x512xf32> to vector<2x128xf32>
    %165 = math.tanh %164 : vector<2x128xf32>
    %166 = vector.extract_strided_slice %151 {offsets = [0, 384], sizes = [2, 128], strides = [1, 1]} : vector<2x512xf32> to vector<2x128xf32>
    %167 = arith.negf %166 : vector<2x128xf32>
    %168 = math.exp %167 : vector<2x128xf32>
    %cst_32 = arith.constant 1.000000e+00 : f32
    %169 = vector.broadcast %cst_32 : f32 to vector<2x128xf32>
    %170 = arith.addf %169, %168 : vector<2x128xf32>
    %171 = arith.divf %169, %170 : vector<2x128xf32>
    %172 = arith.mulf %163, %146 : vector<2x128xf32>
    %173 = arith.mulf %157, %165 : vector<2x128xf32>
    %174 = arith.addf %172, %173 : vector<2x128xf32>
    %175 = math.tanh %174 : vector<2x128xf32>
    %176 = arith.mulf %171, %175 : vector<2x128xf32>
    %177 = vector.extract_strided_slice %5 {offsets = [12, 0], sizes = [2, 512], strides = [1, 1]} : vector<16x512xf32> to vector<2x512xf32>
    %cst_33 = arith.constant dense<0.000000e+00> : vector<2x512xf32>
    %178 = tpu.matmul %176, %6, %cst_33 {dimension_numbers = #tpu.dot_dimension_numbers<[1], [0], [0], [1], [0, 0, 1, 1], [], []>} : vector<2x128xf32>, vector<128x512xf32>, vector<2x512xf32> -> vector<2x512xf32>
    %179 = arith.addf %177, %178 : vector<2x512xf32>
    %180 = vector.extract_strided_slice %179 {offsets = [0, 0], sizes = [2, 128], strides = [1, 1]} : vector<2x512xf32> to vector<2x128xf32>
    %181 = arith.negf %180 : vector<2x128xf32>
    %182 = math.exp %181 : vector<2x128xf32>
    %cst_34 = arith.constant 1.000000e+00 : f32
    %183 = vector.broadcast %cst_34 : f32 to vector<2x128xf32>
    %184 = arith.addf %183, %182 : vector<2x128xf32>
    %185 = arith.divf %183, %184 : vector<2x128xf32>
    %186 = vector.extract_strided_slice %179 {offsets = [0, 128], sizes = [2, 128], strides = [1, 1]} : vector<2x512xf32> to vector<2x128xf32>
    %187 = arith.negf %186 : vector<2x128xf32>
    %188 = math.exp %187 : vector<2x128xf32>
    %cst_35 = arith.constant 1.000000e+00 : f32
    %189 = vector.broadcast %cst_35 : f32 to vector<2x128xf32>
    %190 = arith.addf %189, %188 : vector<2x128xf32>
    %191 = arith.divf %189, %190 : vector<2x128xf32>
    %192 = vector.extract_strided_slice %179 {offsets = [0, 256], sizes = [2, 128], strides = [1, 1]} : vector<2x512xf32> to vector<2x128xf32>
    %193 = math.tanh %192 : vector<2x128xf32>
    %194 = vector.extract_strided_slice %179 {offsets = [0, 384], sizes = [2, 128], strides = [1, 1]} : vector<2x512xf32> to vector<2x128xf32>
    %195 = arith.negf %194 : vector<2x128xf32>
    %196 = math.exp %195 : vector<2x128xf32>
    %cst_36 = arith.constant 1.000000e+00 : f32
    %197 = vector.broadcast %cst_36 : f32 to vector<2x128xf32>
    %198 = arith.addf %197, %196 : vector<2x128xf32>
    %199 = arith.divf %197, %198 : vector<2x128xf32>
    %200 = arith.mulf %191, %174 : vector<2x128xf32>
    %201 = arith.mulf %185, %193 : vector<2x128xf32>
    %202 = arith.addf %200, %201 : vector<2x128xf32>
    %203 = math.tanh %202 : vector<2x128xf32>
    %204 = arith.mulf %199, %203 : vector<2x128xf32>
    %205 = vector.extract_strided_slice %5 {offsets = [14, 0], sizes = [2, 512], strides = [1, 1]} : vector<16x512xf32> to vector<2x512xf32>
    %cst_37 = arith.constant dense<0.000000e+00> : vector<2x512xf32>
    %206 = tpu.matmul %204, %6, %cst_37 {dimension_numbers = #tpu.dot_dimension_numbers<[1], [0], [0], [1], [0, 0, 1, 1], [], []>} : vector<2x128xf32>, vector<128x512xf32>, vector<2x512xf32> -> vector<2x512xf32>
    %207 = arith.addf %205, %206 : vector<2x512xf32>
    %208 = vector.extract_strided_slice %207 {offsets = [0, 0], sizes = [2, 128], strides = [1, 1]} : vector<2x512xf32> to vector<2x128xf32>
    %209 = arith.negf %208 : vector<2x128xf32>
    %210 = math.exp %209 : vector<2x128xf32>
    %cst_38 = arith.constant 1.000000e+00 : f32
    %211 = vector.broadcast %cst_38 : f32 to vector<2x128xf32>
    %212 = arith.addf %211, %210 : vector<2x128xf32>
    %213 = arith.divf %211, %212 : vector<2x128xf32>
    %214 = vector.extract_strided_slice %207 {offsets = [0, 128], sizes = [2, 128], strides = [1, 1]} : vector<2x512xf32> to vector<2x128xf32>
    %215 = arith.negf %214 : vector<2x128xf32>
    %216 = math.exp %215 : vector<2x128xf32>
    %cst_39 = arith.constant 1.000000e+00 : f32
    %217 = vector.broadcast %cst_39 : f32 to vector<2x128xf32>
    %218 = arith.addf %217, %216 : vector<2x128xf32>
    %219 = arith.divf %217, %218 : vector<2x128xf32>
    %220 = vector.extract_strided_slice %207 {offsets = [0, 256], sizes = [2, 128], strides = [1, 1]} : vector<2x512xf32> to vector<2x128xf32>
    %221 = math.tanh %220 : vector<2x128xf32>
    %222 = vector.extract_strided_slice %207 {offsets = [0, 384], sizes = [2, 128], strides = [1, 1]} : vector<2x512xf32> to vector<2x128xf32>
    %223 = arith.negf %222 : vector<2x128xf32>
    %224 = math.exp %223 : vector<2x128xf32>
    %cst_40 = arith.constant 1.000000e+00 : f32
    %225 = vector.broadcast %cst_40 : f32 to vector<2x128xf32>
    %226 = arith.addf %225, %224 : vector<2x128xf32>
    %227 = arith.divf %225, %226 : vector<2x128xf32>
    %228 = arith.mulf %219, %202 : vector<2x128xf32>
    %229 = arith.mulf %213, %221 : vector<2x128xf32>
    %230 = arith.addf %228, %229 : vector<2x128xf32>
    %231 = math.tanh %230 : vector<2x128xf32>
    %232 = arith.mulf %227, %231 : vector<2x128xf32>
    %c0_41 = arith.constant 0 : index
    %c0_42 = arith.constant 0 : index
    %233 = vector.load %arg4[%c0_41, %c0_42] : memref<128x128xf32, #tpu.memory_space<vmem>>, vector<128x128xf32>
    %cst_43 = arith.constant dense<0.000000e+00> : vector<2x128xf32>
    %234 = tpu.matmul %232, %233, %cst_43 {dimension_numbers = #tpu.dot_dimension_numbers<[1], [0], [0], [1], [0, 0, 1, 1], [], []>} : vector<2x128xf32>, vector<128x128xf32>, vector<2x128xf32> -> vector<2x128xf32>
    %c0_44 = arith.constant 0 : index
    %c0_45 = arith.constant 0 : index
    %235 = vector.load %arg5[%c0_44, %c0_45] : memref<1x128xf32, #tpu.memory_space<vmem>>, vector<1x128xf32>
    %236 = vector.broadcast %235 : vector<1x128xf32> to vector<2x128xf32>
    %237 = arith.addf %234, %236 : vector<2x128xf32>
    %c0_46 = arith.constant 0 : index
    %c0_47 = arith.constant 0 : index
    %238 = vector.load %arg6[%c0_46, %c0_47] : memref<2x128xf32, #tpu.memory_space<vmem>>, vector<2x128xf32>
    tpu.vector_store %arg6[%c0_46, %c0_47], %237 {strides = array<i32>} : memref<2x128xf32, #tpu.memory_space<vmem>>, vector<2x128xf32>,
    return
  }
}

</mosaic_0001>

<llo_original>
// kernel: tpu_custom_call.1
$region0: #{tpu_custom_call.1}
  #allocation0 [shape = 'u32[]', space=smem, size = 0x4, offset = 0x4, fixed_abs, tag = 'smem constant byte address 0x4 - core index']
  #allocation1 [shape = 'u32[72,128]{1,0:T(1,128)}', space=vmem, size = 0x9000, scoped, tag = 'internal scratch']
  %s0 = inlined_call_operand.vmem [shape: f32[16,1], index: 0, kind: input, shape index: {}]
  %s1 = inlined_call_operand.vmem [shape: f32[1,512], index: 1, kind: input, shape index: {}]
  %s2 = inlined_call_operand.hbm [shape: f32[128,512], index: 2, kind: input, shape index: {}]
  %s3 = inlined_call_operand.vmem [shape: f32[1,512], index: 3, kind: input, shape index: {}]
  %s4 = inlined_call_operand.hbm [shape: f32[128,128], index: 4, kind: input, shape index: {}]
  %s5 = inlined_call_operand.vmem [shape: f32[1,128], index: 5, kind: input, shape index: {}]
  %s6 = inlined_call_operand.hbm [shape: f32[2,128], index: 6, kind: output, shape index: {}]
  %s7 = sld [smem:[#allocation0]]
  $region42: #{tpu_custom_call.1} parent=0
    _
  %s9 = ssub.s32 1, %s7
  %s10 = scalar_select 0, %s9, %s7
  $region1: #{tpu_custom_call.1} parent=0
    #allocation2 [shape = 'u8[262144]{0}', space=vmem, size = 0x40000, scoped, tag = 'input window, operand 2, single buffered']
    #allocation3 [shape = 's32[1]{0}', space=sflag, size = 0x4, scoped, tag = 'scoped memory for tpu_custom_call.1']
    #allocation4 [shape = 's32[1]{0}', space=sflag, size = 0x4, scoped, tag = 'scoped memory for tpu_custom_call.1']
    #allocation5 [shape = 'u8[65536]{0}', space=vmem, size = 0x10000, scoped, tag = 'input window, operand 4, single buffered']
    #allocation6 [shape = 's32[1]{0}', space=sflag, size = 0x4, scoped, tag = 'scoped memory for tpu_custom_call.1']
    #allocation7 [shape = 'u8[1024]{0}', space=vmem, size = 0x400, scoped, tag = 'output window, operand 0, single buffered']
    %11 = vsyncpa [#allocation3], 0
    %12 = vsyncpa [#allocation6], 0
    %13 = vsyncpa [#allocation4], 0
    // Predicated region
    $region2: #{tpu_custom_call.1} parent=1 // pred_check
      _
    $region3: #{tpu_custom_call.1} parent=1 // pred_check_branch
      %15 = sbr.rel (0) target = $region5
    $region4: #{tpu_custom_call.1} parent=1 // pred_region
      _
    $region5: #{tpu_custom_call.1} parent=1 // pred_fallthru
      _
    // Predicated region
    $region6: #{tpu_custom_call.1} parent=1 // pred_check
      _
    $region7: #{tpu_custom_call.1} parent=1 // pred_check_branch
      %17 = sbr.rel (0) target = $region9
    $region8: #{tpu_custom_call.1} parent=1 // pred_region
      _
    $region9: #{tpu_custom_call.1} parent=1 // pred_fallthru
      _
    // Predicated region
    $region10: #{tpu_custom_call.1} parent=1 // pred_check
      _
    $region11: #{tpu_custom_call.1} parent=1 // pred_check_branch
      %19 = sbr.rel (0) target = $region13
    $region12: #{tpu_custom_call.1} parent=1 // pred_region
      %21 = vsyncadd [#allocation3], 0
      %s22 = sshll.u32 %s2, 4
      %s23 = int_to_ptr.hbm [resolvable:$true] %s22
      %s24 = sshll.u32 [#allocation2], 4
      %s25 = int_to_ptr.vmem [resolvable:$true] %s24
      %30 = dma.hbm_to_vmem [thread:$0]  %s23, 8192, %s25, [#allocation3], 512, 512, 32
    $region13: #{tpu_custom_call.1} parent=1 // pred_fallthru
      _
    // Predicated region
    $region14: #{tpu_custom_call.1} parent=1 // pred_check
      _
    $region15: #{tpu_custom_call.1} parent=1 // pred_check_branch
      %32 = sbr.rel (0) target = $region17
    $region16: #{tpu_custom_call.1} parent=1 // pred_region
      _
    $region17: #{tpu_custom_call.1} parent=1 // pred_fallthru
      _
    // Predicated region
    $region18: #{tpu_custom_call.1} parent=1 // pred_check
      _
    $region19: #{tpu_custom_call.1} parent=1 // pred_check_branch
      %34 = sbr.rel (0) target = $region21
    $region20: #{tpu_custom_call.1} parent=1 // pred_region
      %36 = vsyncadd [#allocation6], 0
      %s37 = sshll.u32 %s4, 4
      %s38 = int_to_ptr.hbm [resolvable:$true] %s37
      %s39 = sshll.u32 [#allocation5], 4
      %s40 = int_to_ptr.vmem [resolvable:$true] %s39
      %45 = dma.hbm_to_vmem [thread:$0]  %s38, 2048, %s40, [#allocation6], 128, 128, 8
    $region21: #{tpu_custom_call.1} parent=1 // pred_fallthru
      _
    // Predicated region
    $region22: #{tpu_custom_call.1} parent=1 // pred_check
      _
    $region23: #{tpu_custom_call.1} parent=1 // pred_check_branch
      %47 = sbr.rel (0) target = $region25
    $region24: #{tpu_custom_call.1} parent=1 // pred_region
      _
    $region25: #{tpu_custom_call.1} parent=1 // pred_fallthru
      _
    // Predicated region
    $region26: #{tpu_custom_call.1} parent=1 // pred_check
      _
    $region27: #{tpu_custom_call.1} parent=1 // pred_check_branch
      %49 = sbr.rel (0) target = $region29
    $region28: #{tpu_custom_call.1} parent=1 // pred_region
      %51 = dma.done [#allocation3], 8192
    $region29: #{tpu_custom_call.1} parent=1 // pred_fallthru
      _
    // Predicated region
    $region30: #{tpu_custom_call.1} parent=1 // pred_check
      _
    $region31: #{tpu_custom_call.1} parent=1 // pred_check_branch
      %53 = sbr.rel (0) target = $region33
    $region32: #{tpu_custom_call.1} parent=1 // pred_region
      %55 = dma.done [#allocation6], 2048
    $region33: #{tpu_custom_call.1} parent=1 // pred_fallthru
      _
    %v56 = vld [vmem:[%s0] sm:$0xff]
    %v57 = vld [vmem:[%s0 + $0x8] sm:$0xff]
    %v58 = vld [vmem:[%s1] sm:$0xf]
    %v59 = vld [vmem:[%s3] sm:$0xf]
    %v61 = vperm.slane %v59, 0
    %v62 = vperm.slane %v59, 1
    %v63 = vperm.slane %v59, 2
    %v64 = vperm.slane %v59, 3
    %v70 = vperm.slane %v58, 0
    %v71 = vperm.slane %v58, 1
    %v72 = vperm.slane %v58, 2
    %v73 = vperm.slane %v58, 3
    %vm74 = vcmask 7168
    %v76 = vsel %vm74, %v56, 0
    %v79 = vsel %vm74, %v57, 0
    %vm81 = vcmask 1040384
    %v82 = vsel %vm81, %v70, 0
    %v84 = vsel %vm81, %v71, 0
    %v86 = vsel %vm81, %v72, 0
    %v88 = vsel %vm81, %v73, 0
    %90 = vmatpush.msra.mxu0 0.0
    %91 = vmatpush.msra.mxu0 0.0
    %92 = vmatpush.msra.mxu0 0.0
    %93 = vmatpush.msra.mxu0 0.0
    %94 = vmatpush.msra.mxu0 0.0
    %95 = vmatpush.msra.mxu0 0.0
    %96 = vmatpush.msra.mxu0 0.0
    %97 = vmatpush.msra.mxu0 0.0
    %98 = vmatpush.msra.mxu0 0.0
    %99 = vmatpush.msra.mxu0 0.0
    %100 = vmatpush.msra.mxu0 0.0
    %101 = vmatpush.msra.mxu0 0.0
    %102 = vmatpush.msra.mxu0 0.0
    %103 = vmatpush.msra.mxu0 0.0
    %104 = vmatpush.msra.mxu0 0.0
    %105 = vmatpush.msra.mxu0 %v82
    %106 = vmatmul.f32.gmra.mxu0 %v76
    %v107 = vpop.f32.mrf.mxu0
    %v108 = vadd.f32 %v61, %v107
    %109 = vmatmul.f32.gmra.mxu0 %v79
    %v110 = vpop.f32.mrf.mxu0
    %v111 = vadd.f32 %v61, %v110
    %112 = vdwg.mxu0
    %113 = vmatpush.msra.mxu0 0.0
    %114 = vmatpush.msra.mxu0 0.0
    %115 = vmatpush.msra.mxu0 0.0
    %116 = vmatpush.msra.mxu0 0.0
    %117 = vmatpush.msra.mxu0 0.0
    %118 = vmatpush.msra.mxu0 0.0
    %119 = vmatpush.msra.mxu0 0.0
    %120 = vmatpush.msra.mxu0 0.0
    %121 = vmatpush.msra.mxu0 0.0
    %122 = vmatpush.msra.mxu0 0.0
    %123 = vmatpush.msra.mxu0 0.0
    %124 = vmatpush.msra.mxu0 0.0
    %125 = vmatpush.msra.mxu0 0.0
    %126 = vmatpush.msra.mxu0 0.0
    %127 = vmatpush.msra.mxu0 0.0
    %128 = vmatpush.msra.mxu0 %v84
    %129 = vmatmul.f32.gmra.mxu0 %v76
    %v130 = vpop.f32.mrf.mxu0
    %v131 = vadd.f32 %v62, %v130
    %132 = vmatmul.f32.gmra.mxu0 %v79
    %v133 = vpop.f32.mrf.mxu0
    %v134 = vadd.f32 %v62, %v133
    %135 = vdwg.mxu0
    %136 = vmatpush.msra.mxu0 0.0
    %137 = vmatpush.msra.mxu0 0.0
    %138 = vmatpush.msra.mxu0 0.0
    %139 = vmatpush.msra.mxu0 0.0
    %140 = vmatpush.msra.mxu0 0.0
    %141 = vmatpush.msra.mxu0 0.0
    %142 = vmatpush.msra.mxu0 0.0
    %143 = vmatpush.msra.mxu0 0.0
    %144 = vmatpush.msra.mxu0 0.0
    %145 = vmatpush.msra.mxu0 0.0
    %146 = vmatpush.msra.mxu0 0.0
    %147 = vmatpush.msra.mxu0 0.0
    %148 = vmatpush.msra.mxu0 0.0
    %149 = vmatpush.msra.mxu0 0.0
    %150 = vmatpush.msra.mxu0 0.0
    %151 = vmatpush.msra.mxu0 %v86
    %152 = vmatmul.f32.gmra.mxu0 %v76
    %v153 = vpop.f32.mrf.mxu0
    %v154 = vadd.f32 %v63, %v153
    %155 = vmatmul.f32.gmra.mxu0 %v79
    %v156 = vpop.f32.mrf.mxu0
    %v157 = vadd.f32 %v63, %v156
    %158 = vdwg.mxu0
    %159 = vmatpush.msra.mxu0 0.0
    %160 = vmatpush.msra.mxu0 0.0
    %161 = vmatpush.msra.mxu0 0.0
    %162 = vmatpush.msra.mxu0 0.0
    %163 = vmatpush.msra.mxu0 0.0
    %164 = vmatpush.msra.mxu0 0.0
    %165 = vmatpush.msra.mxu0 0.0
    %166 = vmatpush.msra.mxu0 0.0
    %167 = vmatpush.msra.mxu0 0.0
    %168 = vmatpush.msra.mxu0 0.0
    %169 = vmatpush.msra.mxu0 0.0
    %170 = vmatpush.msra.mxu0 0.0
    %171 = vmatpush.msra.mxu0 0.0
    %172 = vmatpush.msra.mxu0 0.0
    %173 = vmatpush.msra.mxu0 0.0
    %174 = vmatpush.msra.mxu0 %v88
    %175 = vmatmul.f32.gmra.mxu0 %v76
    %v176 = vpop.f32.mrf.mxu0
    %v177 = vadd.f32 %v64, %v176
    %178 = vmatmul.f32.gmra.mxu0 %v79
    %v179 = vpop.f32.mrf.mxu0
    %v180 = vadd.f32 %v64, %v179
    %181 = vdwg.mxu0
    %v182 = vld [vmem:[#allocation2] sm:$0xff]
    %v183 = vld [vmem:[#allocation2 + $0x8] sm:$0xff]
    %v184 = vld [vmem:[#allocation2 + $0x10] sm:$0xff]
    %v185 = vld [vmem:[#allocation2 + $0x18] sm:$0xff]
    %v186 = vld [vmem:[#allocation2 + $0x20] sm:$0xff]
    %v187 = vld [vmem:[#allocation2 + $0x28] sm:$0xff]
    %v188 = vld [vmem:[#allocation2 + $0x30] sm:$0xff]
    %v189 = vld [vmem:[#allocation2 + $0x38] sm:$0xff]
    %v190 = vld [vmem:[#allocation2 + $0x40] sm:$0xff]
    %v191 = vld [vmem:[#allocation2 + $0x48] sm:$0xff]
    %v192 = vld [vmem:[#allocation2 + $0x50] sm:$0xff]
    %v193 = vld [vmem:[#allocation2 + $0x58] sm:$0xff]
    %v194 = vld [vmem:[#allocation2 + $0x60] sm:$0xff]
    %v195 = vld [vmem:[#allocation2 + $0x68] sm:$0xff]
    %v196 = vld [vmem:[#allocation2 + $0x70] sm:$0xff]
    %v197 = vld [vmem:[#allocation2 + $0x78] sm:$0xff]
    %v198 = vld [vmem:[#allocation2 + $0x80] sm:$0xff]
    %v199 = vld [vmem:[#allocation2 + $0x88] sm:$0xff]
    %v200 = vld [vmem:[#allocation2 + $0x90] sm:$0xff]
    %v201 = vld [vmem:[#allocation2 + $0x98] sm:$0xff]
    %v202 = vld [vmem:[#allocation2 + $0xa0] sm:$0xff]
    %v203 = vld [vmem:[#allocation2 + $0xa8] sm:$0xff]
    %v204 = vld [vmem:[#allocation2 + $0xb0] sm:$0xff]
    %v205 = vld [vmem:[#allocation2 + $0xb8] sm:$0xff]
    %v206 = vld [vmem:[#allocation2 + $0xc0] sm:$0xff]
    %v207 = vld [vmem:[#allocation2 + $0xc8] sm:$0xff]
    %v208 = vld [vmem:[#allocation2 + $0xd0] sm:$0xff]
    %v209 = vld [vmem:[#allocation2 + $0xd8] sm:$0xff]
    %v210 = vld [vmem:[#allocation2 + $0xe0] sm:$0xff]
    %v211 = vld [vmem:[#allocation2 + $0xe8] sm:$0xff]
    %v212 = vld [vmem:[#allocation2 + $0xf0] sm:$0xff]
    %v213 = vld [vmem:[#allocation2 + $0xf8] sm:$0xff]
    %v214 = vld [vmem:[#allocation2 + $0x100] sm:$0xff]
    %v215 = vld [vmem:[#allocation2 + $0x108] sm:$0xff]
    %v216 = vld [vmem:[#allocation2 + $0x110] sm:$0xff]
    %v217 = vld [vmem:[#allocation2 + $0x118] sm:$0xff]
    %v218 = vld [vmem:[#allocation2 + $0x120] sm:$0xff]
    %v219 = vld [vmem:[#allocation2 + $0x128] sm:$0xff]
    %v220 = vld [vmem:[#allocation2 + $0x130] sm:$0xff]
    %v221 = vld [vmem:[#allocation2 + $0x138] sm:$0xff]
    %v222 = vld [vmem:[#allocation2 + $0x140] sm:$0xff]
    %v223 = vld [vmem:[#allocation2 + $0x148] sm:$0xff]
    %v224 = vld [vmem:[#allocation2 + $0x150] sm:$0xff]
    %v225 = vld [vmem:[#allocation2 + $0x158] sm:$0xff]
    %v226 = vld [vmem:[#allocation2 + $0x160] sm:$0xff]
    %v227 = vld [vmem:[#allocation2 + $0x168] sm:$0xff]
    %v228 = vld [vmem:[#allocation2 + $0x170] sm:$0xff]
    %v229 = vld [vmem:[#allocation2 + $0x178] sm:$0xff]
    %v230 = vld [vmem:[#allocation2 + $0x180] sm:$0xff]
    %v231 = vld [vmem:[#allocation2 + $0x188] sm:$0xff]
    %v232 = vld [vmem:[#allocation2 + $0x190] sm:$0xff]
    %v233 = vld [vmem:[#allocation2 + $0x198] sm:$0xff]
    %v234 = vld [vmem:[#allocation2 + $0x1a0] sm:$0xff]
    %v235 = vld [vmem:[#allocation2 + $0x1a8] sm:$0xff]
    %v236 = vld [vmem:[#allocation2 + $0x1b0] sm:$0xff]
    %v237 = vld [vmem:[#allocation2 + $0x1b8] sm:$0xff]
    %v238 = vld [vmem:[#allocation2 + $0x1c0] sm:$0xff]
    %v239 = vld [vmem:[#allocation2 + $0x1c8] sm:$0xff]
    %v240 = vld [vmem:[#allocation2 + $0x1d0] sm:$0xff]
    %v241 = vld [vmem:[#allocation2 + $0x1d8] sm:$0xff]
    %v242 = vld [vmem:[#allocation2 + $0x1e0] sm:$0xff]
    %v243 = vld [vmem:[#allocation2 + $0x1e8] sm:$0xff]
    %v244 = vld [vmem:[#allocation2 + $0x1f0] sm:$0xff]
    %v245 = vld [vmem:[#allocation2 + $0x1f8] sm:$0xff]
    %246 = vmatpush.msra.mxu0 %v242
    %247 = vmatpush.msra.mxu0 %v238
    %248 = vmatpush.msra.mxu0 %v234
    %249 = vmatpush.msra.mxu0 %v230
    %250 = vmatpush.msra.mxu0 %v226
    %251 = vmatpush.msra.mxu0 %v222
    %252 = vmatpush.msra.mxu0 %v218
    %253 = vmatpush.msra.mxu0 %v214
    %254 = vmatpush.msra.mxu0 %v210
    %255 = vmatpush.msra.mxu0 %v206
    %256 = vmatpush.msra.mxu0 %v202
    %257 = vmatpush.msra.mxu0 %v198
    %258 = vmatpush.msra.mxu0 %v194
    %259 = vmatpush.msra.mxu0 %v190
    %260 = vmatpush.msra.mxu0 %v186
    %261 = vmatpush.msra.mxu0 %v182
    %262 = vmatmul.f32.gmra.mxu0 0.0
    %v263 = vpop.f32.mrf.mxu0
    %v264 = vadd.f32 0.0, %v263
    %265 = vdwg.mxu0
    %266 = vmatpush.msra.mxu0 %v243
    %267 = vmatpush.msra.mxu0 %v239
    %268 = vmatpush.msra.mxu0 %v235
    %269 = vmatpush.msra.mxu0 %v231
    %270 = vmatpush.msra.mxu0 %v227
    %271 = vmatpush.msra.mxu0 %v223
    %272 = vmatpush.msra.mxu0 %v219
    %273 = vmatpush.msra.mxu0 %v215
    %274 = vmatpush.msra.mxu0 %v211
    %275 = vmatpush.msra.mxu0 %v207
    %276 = vmatpush.msra.mxu0 %v203
    %277 = vmatpush.msra.mxu0 %v199
    %278 = vmatpush.msra.mxu0 %v195
    %279 = vmatpush.msra.mxu0 %v191
    %280 = vmatpush.msra.mxu0 %v187
    %281 = vmatpush.msra.mxu0 %v183
    %282 = vmatmul.f32.gmra.mxu0 0.0
    %v283 = vpop.f32.mrf.mxu0
    %v284 = vadd.f32 0.0, %v283
    %285 = vdwg.mxu0
    %286 = vmatpush.msra.mxu0 %v244
    %287 = vmatpush.msra.mxu0 %v240
    %288 = vmatpush.msra.mxu0 %v236
    %289 = vmatpush.msra.mxu0 %v232
    %290 = vmatpush.msra.mxu0 %v228
    %291 = vmatpush.msra.mxu0 %v224
    %292 = vmatpush.msra.mxu0 %v220
    %293 = vmatpush.msra.mxu0 %v216
    %294 = vmatpush.msra.mxu0 %v212
    %295 = vmatpush.msra.mxu0 %v208
    %296 = vmatpush.msra.mxu0 %v204
    %297 = vmatpush.msra.mxu0 %v200
    %298 = vmatpush.msra.mxu0 %v196
    %299 = vmatpush.msra.mxu0 %v192
    %300 = vmatpush.msra.mxu0 %v188
    %301 = vmatpush.msra.mxu0 %v184
    %302 = vmatmul.f32.gmra.mxu0 0.0
    %v303 = vpop.f32.mrf.mxu0
    %v304 = vadd.f32 0.0, %v303
    %305 = vdwg.mxu0
    %306 = vmatpush.msra.mxu0 %v245
    %307 = vmatpush.msra.mxu0 %v241
    %308 = vmatpush.msra.mxu0 %v237
    %309 = vmatpush.msra.mxu0 %v233
    %310 = vmatpush.msra.mxu0 %v229
    %311 = vmatpush.msra.mxu0 %v225
    %312 = vmatpush.msra.mxu0 %v221
    %313 = vmatpush.msra.mxu0 %v217
    %314 = vmatpush.msra.mxu0 %v213
    %315 = vmatpush.msra.mxu0 %v209
    %316 = vmatpush.msra.mxu0 %v205
    %317 = vmatpush.msra.mxu0 %v201
    %318 = vmatpush.msra.mxu0 %v197
    %319 = vmatpush.msra.mxu0 %v193
    %320 = vmatpush.msra.mxu0 %v189
    %321 = vmatpush.msra.mxu0 %v185
    %322 = vmatmul.f32.gmra.mxu0 0.0
    %v323 = vpop.f32.mrf.mxu0
    %v324 = vadd.f32 0.0, %v323
    %325 = vdwg.mxu0
    %v326 = vadd.f32 %v108, %v264
    %v327 = vadd.f32 %v131, %v284
    %v328 = vadd.f32 %v154, %v304
    %v329 = vadd.f32 %v177, %v324
    %v330 = vxor.u32 %v326, 2147483648
    %v331 = vmul.f32 %v330, 1.442695
    %v332 = vpow.pop %v331
    %v333 = vadd.f32 %v332, 1.0
    %v334 = vrcp.pop %v333
    %v335 = vmul.f32 %v333, %v334
    %v336 = vsub.f32 1.0, %v335
    %v337 = vmul.f32 %v334, %v336
    %v338 = vadd.f32 %v334, %v337
    %vm339 = vweird.f32 %v333
    %vm340 = vweird.f32 %v334
    %vm341 = vmor %vm339, %vm340
    %v342 = vsel %vm341, %v334, %v338
    %v343 = vand.u32 2147483647, %v333
    %vm344 = vcmp.eq.f32.partialorder %v343, 8.507059e+37
    %v345 = vand.u32 %v333, 2147483648
    %v346 = vor.u32 1.1754944e-38, %v345
    %v347 = vsel %vm344, %v346, %v342
    %v348 = vmul.f32 1.0, %v347
    %v349 = vxor.u32 %v327, 2147483648
    %v350 = vmul.f32 %v349, 1.442695
    %v351 = vpow.pop %v350
    %v352 = vadd.f32 %v351, 1.0
    %v353 = vrcp.pop %v352
    %v354 = vmul.f32 %v352, %v353
    %v355 = vsub.f32 1.0, %v354
    %v356 = vmul.f32 %v353, %v355
    %v357 = vadd.f32 %v353, %v356
    %vm358 = vweird.f32 %v352
    %vm359 = vweird.f32 %v353
    %vm360 = vmor %vm358, %vm359
    %v361 = vsel %vm360, %v353, %v357
    %v362 = vand.u32 2147483647, %v352
    %vm363 = vcmp.eq.f32.partialorder %v362, 8.507059e+37
    %v364 = vand.u32 %v352, 2147483648
    %v365 = vor.u32 1.1754944e-38, %v364
    %v366 = vsel %vm363, %v365, %v361
    %v367 = vmul.f32 1.0, %v366
    %v368 = vtanh.pop %v328
    %v369 = vxor.u32 %v329, 2147483648
    %v370 = vmul.f32 %v369, 1.442695
    %v371 = vpow.pop %v370
    %v372 = vadd.f32 %v371, 1.0
    %v373 = vrcp.pop %v372
    %v374 = vmul.f32 %v372, %v373
    %v375 = vsub.f32 1.0, %v374
    %v376 = vmul.f32 %v373, %v375
    %v377 = vadd.f32 %v373, %v376
    %vm378 = vweird.f32 %v372
    %vm379 = vweird.f32 %v373
    %vm380 = vmor %vm378, %vm379
    %v381 = vsel %vm380, %v373, %v377
    %v382 = vand.u32 2147483647, %v372
    %vm383 = vcmp.eq.f32.partialorder %v382, 8.507059e+37
    %v384 = vand.u32 %v372, 2147483648
    %v385 = vor.u32 1.1754944e-38, %v384
    %v386 = vsel %vm383, %v385, %v381
    %v387 = vmul.f32 1.0, %v386
    %v388 = vmul.f32 %v367, 0.0
    %v389 = vmul.f32 %v348, %v368
    %v390 = vadd.f32 %v388, %v389
    %v391 = vtanh.pop %v390
    %v392 = vmul.f32 %v387, %v391
    %393 = vmatpush.msra.mxu0 %v242
    %394 = vmatpush.msra.mxu0 %v238
    %395 = vmatpush.msra.mxu0 %v234
    %396 = vmatpush.msra.mxu0 %v230
    %397 = vmatpush.msra.mxu0 %v226
    %398 = vmatpush.msra.mxu0 %v222
    %399 = vmatpush.msra.mxu0 %v218
    %400 = vmatpush.msra.mxu0 %v214
    %401 = vmatpush.msra.mxu0 %v210
    %402 = vmatpush.msra.mxu0 %v206
    %403 = vmatpush.msra.mxu0 %v202
    %404 = vmatpush.msra.mxu0 %v198
    %405 = vmatpush.msra.mxu0 %v194
    %406 = vmatpush.msra.mxu0 %v190
    %407 = vmatpush.msra.mxu0 %v186
    %408 = vmatpush.msra.mxu0 %v182
    %409 = vmatmul.f32.gmra.mxu0 %v392
    %v410 = vpop.f32.mrf.mxu0
    %v411 = vadd.f32 0.0, %v410
    %412 = vdwg.mxu0
    %413 = vmatpush.msra.mxu0 %v243
    %414 = vmatpush.msra.mxu0 %v239
    %415 = vmatpush.msra.mxu0 %v235
    %416 = vmatpush.msra.mxu0 %v231
    %417 = vmatpush.msra.mxu0 %v227
    %418 = vmatpush.msra.mxu0 %v223
    %419 = vmatpush.msra.mxu0 %v219
    %420 = vmatpush.msra.mxu0 %v215
    %421 = vmatpush.msra.mxu0 %v211
    %422 = vmatpush.msra.mxu0 %v207
    %423 = vmatpush.msra.mxu0 %v203
    %424 = vmatpush.msra.mxu0 %v199
    %425 = vmatpush.msra.mxu0 %v195
    %426 = vmatpush.msra.mxu0 %v191
    %427 = vmatpush.msra.mxu0 %v187
    %428 = vmatpush.msra.mxu0 %v183
    %429 = vmatmul.f32.gmra.mxu0 %v392
    %v430 = vpop.f32.mrf.mxu0
    %v431 = vadd.f32 0.0, %v430
    %432 = vdwg.mxu0
    %433 = vmatpush.msra.mxu0 %v244
    %434 = vmatpush.msra.mxu0 %v240
    %435 = vmatpush.msra.mxu0 %v236
    %436 = vmatpush.msra.mxu0 %v232
    %437 = vmatpush.msra.mxu0 %v228
    %438 = vmatpush.msra.mxu0 %v224
    %439 = vmatpush.msra.mxu0 %v220
    %440 = vmatpush.msra.mxu0 %v216
    %441 = vmatpush.msra.mxu0 %v212
    %442 = vmatpush.msra.mxu0 %v208
    %443 = vmatpush.msra.mxu0 %v204
    %444 = vmatpush.msra.mxu0 %v200
    %445 = vmatpush.msra.mxu0 %v196
    %446 = vmatpush.msra.mxu0 %v192
    %447 = vmatpush.msra.mxu0 %v188
    %448 = vmatpush.msra.mxu0 %v184
    %449 = vmatmul.f32.gmra.mxu0 %v392
    %v450 = vpop.f32.mrf.mxu0
    %v451 = vadd.f32 0.0, %v450
    %452 = vdwg.mxu0
    %453 = vmatpush.msra.mxu0 %v245
    %454 = vmatpush.msra.mxu0 %v241
    %455 = vmatpush.msra.mxu0 %v237
    %456 = vmatpush.msra.mxu0 %v233
    %457 = vmatpush.msra.mxu0 %v229
    %458 = vmatpush.msra.mxu0 %v225
    %459 = vmatpush.msra.mxu0 %v221
    %460 = vmatpush.msra.mxu0 %v217
    %461 = vmatpush.msra.mxu0 %v213
    %462 = vmatpush.msra.mxu0 %v209
    %463 = vmatpush.msra.mxu0 %v205
    %464 = vmatpush.msra.mxu0 %v201
    %465 = vmatpush.msra.mxu0 %v197
    %466 = vmatpush.msra.mxu0 %v193
    %467 = vmatpush.msra.mxu0 %v189
    %468 = vmatpush.msra.mxu0 %v185
    %469 = vmatmul.f32.gmra.mxu0 %v392
    %v470 = vpop.f32.mrf.mxu0
    %v471 = vadd.f32 0.0, %v470
    %472 = vdwg.mxu0
    %v477 = vrot.slane %v411, 6
    %v478 = vrot.slane %v431, 6
    %v479 = vrot.slane %v451, 6
    %v480 = vrot.slane %v471, 6
    %v485 = vadd.f32 %v108, %v477
    %v486 = vadd.f32 %v131, %v478
    %v487 = vadd.f32 %v154, %v479
    %v488 = vadd.f32 %v177, %v480
    %v489 = vxor.u32 %v485, 2147483648
    %v490 = vmul.f32 %v489, 1.442695
    %v491 = vpow.pop %v490
    %v492 = vadd.f32 %v491, 1.0
    %v493 = vrcp.pop %v492
    %v494 = vmul.f32 %v492, %v493
    %v495 = vsub.f32 1.0, %v494
    %v496 = vmul.f32 %v493, %v495
    %v497 = vadd.f32 %v493, %v496
    %vm498 = vweird.f32 %v492
    %vm499 = vweird.f32 %v493
    %vm500 = vmor %vm498, %vm499
    %v501 = vsel %vm500, %v493, %v497
    %v502 = vand.u32 2147483647, %v492
    %vm503 = vcmp.eq.f32.partialorder %v502, 8.507059e+37
    %v504 = vand.u32 %v492, 2147483648
    %v505 = vor.u32 1.1754944e-38, %v504
    %v506 = vsel %vm503, %v505, %v501
    %v507 = vmul.f32 1.0, %v506
    %v508 = vxor.u32 %v486, 2147483648
    %v509 = vmul.f32 %v508, 1.442695
    %v510 = vpow.pop %v509
    %v511 = vadd.f32 %v510, 1.0
    %v512 = vrcp.pop %v511
    %v513 = vmul.f32 %v511, %v512
    %v514 = vsub.f32 1.0, %v513
    %v515 = vmul.f32 %v512, %v514
    %v516 = vadd.f32 %v512, %v515
    %vm517 = vweird.f32 %v511
    %vm518 = vweird.f32 %v512
    %vm519 = vmor %vm517, %vm518
    %v520 = vsel %vm519, %v512, %v516
    %v521 = vand.u32 2147483647, %v511
    %vm522 = vcmp.eq.f32.partialorder %v521, 8.507059e+37
    %v523 = vand.u32 %v511, 2147483648
    %v524 = vor.u32 1.1754944e-38, %v523
    %v525 = vsel %vm522, %v524, %v520
    %v526 = vmul.f32 1.0, %v525
    %v527 = vtanh.pop %v487
    %v528 = vxor.u32 %v488, 2147483648
    %v529 = vmul.f32 %v528, 1.442695
    %v530 = vpow.pop %v529
    %v531 = vadd.f32 %v530, 1.0
    %v532 = vrcp.pop %v531
    %v533 = vmul.f32 %v531, %v532
    %v534 = vsub.f32 1.0, %v533
    %v535 = vmul.f32 %v532, %v534
    %v536 = vadd.f32 %v532, %v535
    %vm537 = vweird.f32 %v531
    %vm538 = vweird.f32 %v532
    %vm539 = vmor %vm537, %vm538
    %v540 = vsel %vm539, %v532, %v536
    %v541 = vand.u32 2147483647, %v531
    %vm542 = vcmp.eq.f32.partialorder %v541, 8.507059e+37
    %v543 = vand.u32 %v531, 2147483648
    %v544 = vor.u32 1.1754944e-38, %v543
    %v545 = vsel %vm542, %v544, %v540
    %v546 = vmul.f32 1.0, %v545
    %v548 = vrot.slane %v390, 6
    %v550 = vmul.f32 %v526, %v548
    %v551 = vmul.f32 %v507, %v527
    %v552 = vadd.f32 %v550, %v551
    %v553 = vtanh.pop %v552
    %v554 = vmul.f32 %v546, %v553
    %v556 = vrot.slane %v554, 2
    %558 = vmatpush.msra.mxu0 %v242
    %559 = vmatpush.msra.mxu0 %v238
    %560 = vmatpush.msra.mxu0 %v234
    %561 = vmatpush.msra.mxu0 %v230
    %562 = vmatpush.msra.mxu0 %v226
    %563 = vmatpush.msra.mxu0 %v222
    %564 = vmatpush.msra.mxu0 %v218
    %565 = vmatpush.msra.mxu0 %v214
    %566 = vmatpush.msra.mxu0 %v210
    %567 = vmatpush.msra.mxu0 %v206
    %568 = vmatpush.msra.mxu0 %v202
    %569 = vmatpush.msra.mxu0 %v198
    %570 = vmatpush.msra.mxu0 %v194
    %571 = vmatpush.msra.mxu0 %v190
    %572 = vmatpush.msra.mxu0 %v186
    %573 = vmatpush.msra.mxu0 %v182
    %574 = vmatmul.f32.gmra.mxu0 %v556
    %v575 = vpop.f32.mrf.mxu0
    %v576 = vadd.f32 0.0, %v575
    %577 = vdwg.mxu0
    %578 = vmatpush.msra.mxu0 %v243
    %579 = vmatpush.msra.mxu0 %v239
    %580 = vmatpush.msra.mxu0 %v235
    %581 = vmatpush.msra.mxu0 %v231
    %582 = vmatpush.msra.mxu0 %v227
    %583 = vmatpush.msra.mxu0 %v223
    %584 = vmatpush.msra.mxu0 %v219
    %585 = vmatpush.msra.mxu0 %v215
    %586 = vmatpush.msra.mxu0 %v211
    %587 = vmatpush.msra.mxu0 %v207
    %588 = vmatpush.msra.mxu0 %v203
    %589 = vmatpush.msra.mxu0 %v199
    %590 = vmatpush.msra.mxu0 %v195
    %591 = vmatpush.msra.mxu0 %v191
    %592 = vmatpush.msra.mxu0 %v187
    %593 = vmatpush.msra.mxu0 %v183
    %594 = vmatmul.f32.gmra.mxu0 %v556
    %v595 = vpop.f32.mrf.mxu0
    %v596 = vadd.f32 0.0, %v595
    %597 = vdwg.mxu0
    %598 = vmatpush.msra.mxu0 %v244
    %599 = vmatpush.msra.mxu0 %v240
    %600 = vmatpush.msra.mxu0 %v236
    %601 = vmatpush.msra.mxu0 %v232
    %602 = vmatpush.msra.mxu0 %v228
    %603 = vmatpush.msra.mxu0 %v224
    %604 = vmatpush.msra.mxu0 %v220
    %605 = vmatpush.msra.mxu0 %v216
    %606 = vmatpush.msra.mxu0 %v212
    %607 = vmatpush.msra.mxu0 %v208
    %608 = vmatpush.msra.mxu0 %v204
    %609 = vmatpush.msra.mxu0 %v200
    %610 = vmatpush.msra.mxu0 %v196
    %611 = vmatpush.msra.mxu0 %v192
    %612 = vmatpush.msra.mxu0 %v188
    %613 = vmatpush.msra.mxu0 %v184
    %614 = vmatmul.f32.gmra.mxu0 %v556
    %v615 = vpop.f32.mrf.mxu0
    %v616 = vadd.f32 0.0, %v615
    %617 = vdwg.mxu0
    %618 = vmatpush.msra.mxu0 %v245
    %619 = vmatpush.msra.mxu0 %v241
    %620 = vmatpush.msra.mxu0 %v237
    %621 = vmatpush.msra.mxu0 %v233
    %622 = vmatpush.msra.mxu0 %v229
    %623 = vmatpush.msra.mxu0 %v225
    %624 = vmatpush.msra.mxu0 %v221
    %625 = vmatpush.msra.mxu0 %v217
    %626 = vmatpush.msra.mxu0 %v213
    %627 = vmatpush.msra.mxu0 %v209
    %628 = vmatpush.msra.mxu0 %v205
    %629 = vmatpush.msra.mxu0 %v201
    %630 = vmatpush.msra.mxu0 %v197
    %631 = vmatpush.msra.mxu0 %v193
    %632 = vmatpush.msra.mxu0 %v189
    %633 = vmatpush.msra.mxu0 %v185
    %634 = vmatmul.f32.gmra.mxu0 %v556
    %v635 = vpop.f32.mrf.mxu0
    %v636 = vadd.f32 0.0, %v635
    %637 = vdwg.mxu0
    %v642 = vrot.slane %v576, 4
    %v643 = vrot.slane %v596, 4
    %v644 = vrot.slane %v616, 4
    %v645 = vrot.slane %v636, 4
    %v650 = vadd.f32 %v108, %v642
    %v651 = vadd.f32 %v131, %v643
    %v652 = vadd.f32 %v154, %v644
    %v653 = vadd.f32 %v177, %v645
    %v654 = vxor.u32 %v650, 2147483648
    %v655 = vmul.f32 %v654, 1.442695
    %v656 = vpow.pop %v655
    %v657 = vadd.f32 %v656, 1.0
    %v658 = vrcp.pop %v657
    %v659 = vmul.f32 %v657, %v658
    %v660 = vsub.f32 1.0, %v659
    %v661 = vmul.f32 %v658, %v660
    %v662 = vadd.f32 %v658, %v661
    %vm663 = vweird.f32 %v657
    %vm664 = vweird.f32 %v658
    %vm665 = vmor %vm663, %vm664
    %v666 = vsel %vm665, %v658, %v662
    %v667 = vand.u32 2147483647, %v657
    %vm668 = vcmp.eq.f32.partialorder %v667, 8.507059e+37
    %v669 = vand.u32 %v657, 2147483648
    %v670 = vor.u32 1.1754944e-38, %v669
    %v671 = vsel %vm668, %v670, %v666
    %v672 = vmul.f32 1.0, %v671
    %v673 = vxor.u32 %v651, 2147483648
    %v674 = vmul.f32 %v673, 1.442695
    %v675 = vpow.pop %v674
    %v676 = vadd.f32 %v675, 1.0
    %v677 = vrcp.pop %v676
    %v678 = vmul.f32 %v676, %v677
    %v679 = vsub.f32 1.0, %v678
    %v680 = vmul.f32 %v677, %v679
    %v681 = vadd.f32 %v677, %v680
    %vm682 = vweird.f32 %v676
    %vm683 = vweird.f32 %v677
    %vm684 = vmor %vm682, %vm683
    %v685 = vsel %vm684, %v677, %v681
    %v686 = vand.u32 2147483647, %v676
    %vm687 = vcmp.eq.f32.partialorder %v686, 8.507059e+37
    %v688 = vand.u32 %v676, 2147483648
    %v689 = vor.u32 1.1754944e-38, %v688
    %v690 = vsel %vm687, %v689, %v685
    %v691 = vmul.f32 1.0, %v690
    %v692 = vtanh.pop %v652
    %v693 = vxor.u32 %v653, 2147483648
    %v694 = vmul.f32 %v693, 1.442695
    %v695 = vpow.pop %v694
    %v696 = vadd.f32 %v695, 1.0
    %v697 = vrcp.pop %v696
    %v698 = vmul.f32 %v696, %v697
    %v699 = vsub.f32 1.0, %v698
    %v700 = vmul.f32 %v697, %v699
    %v701 = vadd.f32 %v697, %v700
    %vm702 = vweird.f32 %v696
    %vm703 = vweird.f32 %v697
    %vm704 = vmor %vm702, %vm703
    %v705 = vsel %vm704, %v697, %v701
    %v706 = vand.u32 2147483647, %v696
    %vm707 = vcmp.eq.f32.partialorder %v706, 8.507059e+37
    %v708 = vand.u32 %v696, 2147483648
    %v709 = vor.u32 1.1754944e-38, %v708
    %v710 = vsel %vm707, %v709, %v705
    %v711 = vmul.f32 1.0, %v710
    %v713 = vrot.slane %v552, 6
    %v715 = vmul.f32 %v691, %v713
    %v716 = vmul.f32 %v672, %v692
    %v717 = vadd.f32 %v715, %v716
    %v718 = vtanh.pop %v717
    %v719 = vmul.f32 %v711, %v718
    %v721 = vrot.slane %v719, 4
    %723 = vmatpush.msra.mxu0 %v242
    %724 = vmatpush.msra.mxu0 %v238
    %725 = vmatpush.msra.mxu0 %v234
    %726 = vmatpush.msra.mxu0 %v230
    %727 = vmatpush.msra.mxu0 %v226
    %728 = vmatpush.msra.mxu0 %v222
    %729 = vmatpush.msra.mxu0 %v218
    %730 = vmatpush.msra.mxu0 %v214
    %731 = vmatpush.msra.mxu0 %v210
    %732 = vmatpush.msra.mxu0 %v206
    %733 = vmatpush.msra.mxu0 %v202
    %734 = vmatpush.msra.mxu0 %v198
    %735 = vmatpush.msra.mxu0 %v194
    %736 = vmatpush.msra.mxu0 %v190
    %737 = vmatpush.msra.mxu0 %v186
    %738 = vmatpush.msra.mxu0 %v182
    %739 = vmatmul.f32.gmra.mxu0 %v721
    %v740 = vpop.f32.mrf.mxu0
    %v741 = vadd.f32 0.0, %v740
    %742 = vdwg.mxu0
    %743 = vmatpush.msra.mxu0 %v243
    %744 = vmatpush.msra.mxu0 %v239
    %745 = vmatpush.msra.mxu0 %v235
    %746 = vmatpush.msra.mxu0 %v231
    %747 = vmatpush.msra.mxu0 %v227
    %748 = vmatpush.msra.mxu0 %v223
    %749 = vmatpush.msra.mxu0 %v219
    %750 = vmatpush.msra.mxu0 %v215
    %751 = vmatpush.msra.mxu0 %v211
    %752 = vmatpush.msra.mxu0 %v207
    %753 = vmatpush.msra.mxu0 %v203
    %754 = vmatpush.msra.mxu0 %v199
    %755 = vmatpush.msra.mxu0 %v195
    %756 = vmatpush.msra.mxu0 %v191
    %757 = vmatpush.msra.mxu0 %v187
    %758 = vmatpush.msra.mxu0 %v183
    %759 = vmatmul.f32.gmra.mxu0 %v721
    %v760 = vpop.f32.mrf.mxu0
    %v761 = vadd.f32 0.0, %v760
    %762 = vdwg.mxu0
    %763 = vmatpush.msra.mxu0 %v244
    %764 = vmatpush.msra.mxu0 %v240
    %765 = vmatpush.msra.mxu0 %v236
    %766 = vmatpush.msra.mxu0 %v232
    %767 = vmatpush.msra.mxu0 %v228
    %768 = vmatpush.msra.mxu0 %v224
    %769 = vmatpush.msra.mxu0 %v220
    %770 = vmatpush.msra.mxu0 %v216
    %771 = vmatpush.msra.mxu0 %v212
    %772 = vmatpush.msra.mxu0 %v208
    %773 = vmatpush.msra.mxu0 %v204
    %774 = vmatpush.msra.mxu0 %v200
    %775 = vmatpush.msra.mxu0 %v196
    %776 = vmatpush.msra.mxu0 %v192
    %777 = vmatpush.msra.mxu0 %v188
    %778 = vmatpush.msra.mxu0 %v184
    %779 = vmatmul.f32.gmra.mxu0 %v721
    %v780 = vpop.f32.mrf.mxu0
    %v781 = vadd.f32 0.0, %v780
    %782 = vdwg.mxu0
    %783 = vmatpush.msra.mxu0 %v245
    %784 = vmatpush.msra.mxu0 %v241
    %785 = vmatpush.msra.mxu0 %v237
    %786 = vmatpush.msra.mxu0 %v233
    %787 = vmatpush.msra.mxu0 %v229
    %788 = vmatpush.msra.mxu0 %v225
    %789 = vmatpush.msra.mxu0 %v221
    %790 = vmatpush.msra.mxu0 %v217
    %791 = vmatpush.msra.mxu0 %v213
    %792 = vmatpush.msra.mxu0 %v209
    %793 = vmatpush.msra.mxu0 %v205
    %794 = vmatpush.msra.mxu0 %v201
    %795 = vmatpush.msra.mxu0 %v197
    %796 = vmatpush.msra.mxu0 %v193
    %797 = vmatpush.msra.mxu0 %v189
    %798 = vmatpush.msra.mxu0 %v185
    %799 = vmatmul.f32.gmra.mxu0 %v721
    %v800 = vpop.f32.mrf.mxu0
    %v801 = vadd.f32 0.0, %v800
    %802 = vdwg.mxu0
    %v807 = vrot.slane %v741, 2
    %v808 = vrot.slane %v761, 2
    %v809 = vrot.slane %v781, 2
    %v810 = vrot.slane %v801, 2
    %v815 = vadd.f32 %v108, %v807
    %v816 = vadd.f32 %v131, %v808
    %v817 = vadd.f32 %v154, %v809
    %v818 = vadd.f32 %v177, %v810
    %v819 = vxor.u32 %v815, 2147483648
    %v820 = vmul.f32 %v819, 1.442695
    %v821 = vpow.pop %v820
    %v822 = vadd.f32 %v821, 1.0
    %v823 = vrcp.pop %v822
    %v824 = vmul.f32 %v822, %v823
    %v825 = vsub.f32 1.0, %v824
    %v826 = vmul.f32 %v823, %v825
    %v827 = vadd.f32 %v823, %v826
    %vm828 = vweird.f32 %v822
    %vm829 = vweird.f32 %v823
    %vm830 = vmor %vm828, %vm829
    %v831 = vsel %vm830, %v823, %v827
    %v832 = vand.u32 2147483647, %v822
    %vm833 = vcmp.eq.f32.partialorder %v832, 8.507059e+37
    %v834 = vand.u32 %v822, 2147483648
    %v835 = vor.u32 1.1754944e-38, %v834
    %v836 = vsel %vm833, %v835, %v831
    %v837 = vmul.f32 1.0, %v836
    %v838 = vxor.u32 %v816, 2147483648
    %v839 = vmul.f32 %v838, 1.442695
    %v840 = vpow.pop %v839
    %v841 = vadd.f32 %v840, 1.0
    %v842 = vrcp.pop %v841
    %v843 = vmul.f32 %v841, %v842
    %v844 = vsub.f32 1.0, %v843
    %v845 = vmul.f32 %v842, %v844
    %v846 = vadd.f32 %v842, %v845
    %vm847 = vweird.f32 %v841
    %vm848 = vweird.f32 %v842
    %vm849 = vmor %vm847, %vm848
    %v850 = vsel %vm849, %v842, %v846
    %v851 = vand.u32 2147483647, %v841
    %vm852 = vcmp.eq.f32.partialorder %v851, 8.507059e+37
    %v853 = vand.u32 %v841, 2147483648
    %v854 = vor.u32 1.1754944e-38, %v853
    %v855 = vsel %vm852, %v854, %v850
    %v856 = vmul.f32 1.0, %v855
    %v857 = vtanh.pop %v817
    %v858 = vxor.u32 %v818, 2147483648
    %v859 = vmul.f32 %v858, 1.442695
    %v860 = vpow.pop %v859
    %v861 = vadd.f32 %v860, 1.0
    %v862 = vrcp.pop %v861
    %v863 = vmul.f32 %v861, %v862
    %v864 = vsub.f32 1.0, %v863
    %v865 = vmul.f32 %v862, %v864
    %v866 = vadd.f32 %v862, %v865
    %vm867 = vweird.f32 %v861
    %vm868 = vweird.f32 %v862
    %vm869 = vmor %vm867, %vm868
    %v870 = vsel %vm869, %v862, %v866
    %v871 = vand.u32 2147483647, %v861
    %vm872 = vcmp.eq.f32.partialorder %v871, 8.507059e+37
    %v873 = vand.u32 %v861, 2147483648
    %v874 = vor.u32 1.1754944e-38, %v873
    %v875 = vsel %vm872, %v874, %v870
    %v876 = vmul.f32 1.0, %v875
    %v878 = vrot.slane %v717, 6
    %v880 = vmul.f32 %v856, %v878
    %v881 = vmul.f32 %v837, %v857
    %v882 = vadd.f32 %v880, %v881
    %v883 = vtanh.pop %v882
    %v884 = vmul.f32 %v876, %v883
    %v886 = vrot.slane %v884, 6
    %888 = vmatpush.msra.mxu0 %v242
    %889 = vmatpush.msra.mxu0 %v238
    %890 = vmatpush.msra.mxu0 %v234
    %891 = vmatpush.msra.mxu0 %v230
    %892 = vmatpush.msra.mxu0 %v226
    %893 = vmatpush.msra.mxu0 %v222
    %894 = vmatpush.msra.mxu0 %v218
    %895 = vmatpush.msra.mxu0 %v214
    %896 = vmatpush.msra.mxu0 %v210
    %897 = vmatpush.msra.mxu0 %v206
    %898 = vmatpush.msra.mxu0 %v202
    %899 = vmatpush.msra.mxu0 %v198
    %900 = vmatpush.msra.mxu0 %v194
    %901 = vmatpush.msra.mxu0 %v190
    %902 = vmatpush.msra.mxu0 %v186
    %903 = vmatpush.msra.mxu0 %v182
    %904 = vmatmul.f32.gmra.mxu0 %v886
    %v905 = vpop.f32.mrf.mxu0
    %v906 = vadd.f32 0.0, %v905
    %907 = vdwg.mxu0
    %908 = vmatpush.msra.mxu0 %v243
    %909 = vmatpush.msra.mxu0 %v239
    %910 = vmatpush.msra.mxu0 %v235
    %911 = vmatpush.msra.mxu0 %v231
    %912 = vmatpush.msra.mxu0 %v227
    %913 = vmatpush.msra.mxu0 %v223
    %914 = vmatpush.msra.mxu0 %v219
    %915 = vmatpush.msra.mxu0 %v215
    %916 = vmatpush.msra.mxu0 %v211
    %917 = vmatpush.msra.mxu0 %v207
    %918 = vmatpush.msra.mxu0 %v203
    %919 = vmatpush.msra.mxu0 %v199
    %920 = vmatpush.msra.mxu0 %v195
    %921 = vmatpush.msra.mxu0 %v191
    %922 = vmatpush.msra.mxu0 %v187
    %923 = vmatpush.msra.mxu0 %v183
    %924 = vmatmul.f32.gmra.mxu0 %v886
    %v925 = vpop.f32.mrf.mxu0
    %v926 = vadd.f32 0.0, %v925
    %927 = vdwg.mxu0
    %928 = vmatpush.msra.mxu0 %v244
    %929 = vmatpush.msra.mxu0 %v240
    %930 = vmatpush.msra.mxu0 %v236
    %931 = vmatpush.msra.mxu0 %v232
    %932 = vmatpush.msra.mxu0 %v228
    %933 = vmatpush.msra.mxu0 %v224
    %934 = vmatpush.msra.mxu0 %v220
    %935 = vmatpush.msra.mxu0 %v216
    %936 = vmatpush.msra.mxu0 %v212
    %937 = vmatpush.msra.mxu0 %v208
    %938 = vmatpush.msra.mxu0 %v204
    %939 = vmatpush.msra.mxu0 %v200
    %940 = vmatpush.msra.mxu0 %v196
    %941 = vmatpush.msra.mxu0 %v192
    %942 = vmatpush.msra.mxu0 %v188
    %943 = vmatpush.msra.mxu0 %v184
    %944 = vmatmul.f32.gmra.mxu0 %v886
    %v945 = vpop.f32.mrf.mxu0
    %v946 = vadd.f32 0.0, %v945
    %947 = vdwg.mxu0
    %948 = vmatpush.msra.mxu0 %v245
    %949 = vmatpush.msra.mxu0 %v241
    %950 = vmatpush.msra.mxu0 %v237
    %951 = vmatpush.msra.mxu0 %v233
    %952 = vmatpush.msra.mxu0 %v229
    %953 = vmatpush.msra.mxu0 %v225
    %954 = vmatpush.msra.mxu0 %v221
    %955 = vmatpush.msra.mxu0 %v217
    %956 = vmatpush.msra.mxu0 %v213
    %957 = vmatpush.msra.mxu0 %v209
    %958 = vmatpush.msra.mxu0 %v205
    %959 = vmatpush.msra.mxu0 %v201
    %960 = vmatpush.msra.mxu0 %v197
    %961 = vmatpush.msra.mxu0 %v193
    %962 = vmatpush.msra.mxu0 %v189
    %963 = vmatpush.msra.mxu0 %v185
    %964 = vmatmul.f32.gmra.mxu0 %v886
    %v965 = vpop.f32.mrf.mxu0
    %v966 = vadd.f32 0.0, %v965
    %967 = vdwg.mxu0
    %v968 = vadd.f32 %v111, %v906
    %v969 = vadd.f32 %v134, %v926
    %v970 = vadd.f32 %v157, %v946
    %v971 = vadd.f32 %v180, %v966
    %v972 = vxor.u32 %v968, 2147483648
    %v973 = vmul.f32 %v972, 1.442695
    %v974 = vpow.pop %v973
    %v975 = vadd.f32 %v974, 1.0
    %v976 = vrcp.pop %v975
    %v977 = vmul.f32 %v975, %v976
    %v978 = vsub.f32 1.0, %v977
    %v979 = vmul.f32 %v976, %v978
    %v980 = vadd.f32 %v976, %v979
    %vm981 = vweird.f32 %v975
    %vm982 = vweird.f32 %v976
    %vm983 = vmor %vm981, %vm982
    %v984 = vsel %vm983, %v976, %v980
    %v985 = vand.u32 2147483647, %v975
    %vm986 = vcmp.eq.f32.partialorder %v985, 8.507059e+37
    %v987 = vand.u32 %v975, 2147483648
    %v988 = vor.u32 1.1754944e-38, %v987
    %v989 = vsel %vm986, %v988, %v984
    %v990 = vmul.f32 1.0, %v989
    %v991 = vxor.u32 %v969, 2147483648
    %v992 = vmul.f32 %v991, 1.442695
    %v993 = vpow.pop %v992
    %v994 = vadd.f32 %v993, 1.0
    %v995 = vrcp.pop %v994
    %v996 = vmul.f32 %v994, %v995
    %v997 = vsub.f32 1.0, %v996
    %v998 = vmul.f32 %v995, %v997
    %v999 = vadd.f32 %v995, %v998
    %vm1000 = vweird.f32 %v994
    %vm1001 = vweird.f32 %v995
    %vm1002 = vmor %vm1000, %vm1001
    %v1003 = vsel %vm1002, %v995, %v999
    %v1004 = vand.u32 2147483647, %v994
    %vm1005 = vcmp.eq.f32.partialorder %v1004, 8.507059e+37
    %v1006 = vand.u32 %v994, 2147483648
    %v1007 = vor.u32 1.1754944e-38, %v1006
    %v1008 = vsel %vm1005, %v1007, %v1003
    %v1009 = vmul.f32 1.0, %v1008
    %v1010 = vtanh.pop %v970
    %v1011 = vxor.u32 %v971, 2147483648
    %v1012 = vmul.f32 %v1011, 1.442695
    %v1013 = vpow.pop %v1012
    %v1014 = vadd.f32 %v1013, 1.0
    %v1015 = vrcp.pop %v1014
    %v1016 = vmul.f32 %v1014, %v1015
    %v1017 = vsub.f32 1.0, %v1016
    %v1018 = vmul.f32 %v1015, %v1017
    %v1019 = vadd.f32 %v1015, %v1018
    %vm1020 = vweird.f32 %v1014
    %vm1021 = vweird.f32 %v1015
    %vm1022 = vmor %vm1020, %vm1021
    %v1023 = vsel %vm1022, %v1015, %v1019
    %v1024 = vand.u32 2147483647, %v1014
    %vm1025 = vcmp.eq.f32.partialorder %v1024, 8.507059e+37
    %v1026 = vand.u32 %v1014, 2147483648
    %v1027 = vor.u32 1.1754944e-38, %v1026
    %v1028 = vsel %vm1025, %v1027, %v1023
    %v1029 = vmul.f32 1.0, %v1028
    %v1031 = vrot.slane %v882, 6
    %v1033 = vmul.f32 %v1009, %v1031
    %v1034 = vmul.f32 %v990, %v1010
    %v1035 = vadd.f32 %v1033, %v1034
    %v1036 = vtanh.pop %v1035
    %v1037 = vmul.f32 %v1029, %v1036
    %1038 = vmatpush.msra.mxu0 %v242
    %1039 = vmatpush.msra.mxu0 %v238
    %1040 = vmatpush.msra.mxu0 %v234
    %1041 = vmatpush.msra.mxu0 %v230
    %1042 = vmatpush.msra.mxu0 %v226
    %1043 = vmatpush.msra.mxu0 %v222
    %1044 = vmatpush.msra.mxu0 %v218
    %1045 = vmatpush.msra.mxu0 %v214
    %1046 = vmatpush.msra.mxu0 %v210
    %1047 = vmatpush.msra.mxu0 %v206
    %1048 = vmatpush.msra.mxu0 %v202
    %1049 = vmatpush.msra.mxu0 %v198
    %1050 = vmatpush.msra.mxu0 %v194
    %1051 = vmatpush.msra.mxu0 %v190
    %1052 = vmatpush.msra.mxu0 %v186
    %1053 = vmatpush.msra.mxu0 %v182
    %1054 = vmatmul.f32.gmra.mxu0 %v1037
    %v1055 = vpop.f32.mrf.mxu0
    %v1056 = vadd.f32 0.0, %v1055
    %1057 = vdwg.mxu0
    %1058 = vmatpush.msra.mxu0 %v243
    %1059 = vmatpush.msra.mxu0 %v239
    %1060 = vmatpush.msra.mxu0 %v235
    %1061 = vmatpush.msra.mxu0 %v231
    %1062 = vmatpush.msra.mxu0 %v227
    %1063 = vmatpush.msra.mxu0 %v223
    %1064 = vmatpush.msra.mxu0 %v219
    %1065 = vmatpush.msra.mxu0 %v215
    %1066 = vmatpush.msra.mxu0 %v211
    %1067 = vmatpush.msra.mxu0 %v207
    %1068 = vmatpush.msra.mxu0 %v203
    %1069 = vmatpush.msra.mxu0 %v199
    %1070 = vmatpush.msra.mxu0 %v195
    %1071 = vmatpush.msra.mxu0 %v191
    %1072 = vmatpush.msra.mxu0 %v187
    %1073 = vmatpush.msra.mxu0 %v183
    %1074 = vmatmul.f32.gmra.mxu0 %v1037
    %v1075 = vpop.f32.mrf.mxu0
    %v1076 = vadd.f32 0.0, %v1075
    %1077 = vdwg.mxu0
    %1078 = vmatpush.msra.mxu0 %v244
    %1079 = vmatpush.msra.mxu0 %v240
    %1080 = vmatpush.msra.mxu0 %v236
    %1081 = vmatpush.msra.mxu0 %v232
    %1082 = vmatpush.msra.mxu0 %v228
    %1083 = vmatpush.msra.mxu0 %v224
    %1084 = vmatpush.msra.mxu0 %v220
    %1085 = vmatpush.msra.mxu0 %v216
    %1086 = vmatpush.msra.mxu0 %v212
    %1087 = vmatpush.msra.mxu0 %v208
    %1088 = vmatpush.msra.mxu0 %v204
    %1089 = vmatpush.msra.mxu0 %v200
    %1090 = vmatpush.msra.mxu0 %v196
    %1091 = vmatpush.msra.mxu0 %v192
    %1092 = vmatpush.msra.mxu0 %v188
    %1093 = vmatpush.msra.mxu0 %v184
    %1094 = vmatmul.f32.gmra.mxu0 %v1037
    %v1095 = vpop.f32.mrf.mxu0
    %v1096 = vadd.f32 0.0, %v1095
    %1097 = vdwg.mxu0
    %1098 = vmatpush.msra.mxu0 %v245
    %1099 = vmatpush.msra.mxu0 %v241
    %1100 = vmatpush.msra.mxu0 %v237
    %1101 = vmatpush.msra.mxu0 %v233
    %1102 = vmatpush.msra.mxu0 %v229
    %1103 = vmatpush.msra.mxu0 %v225
    %1104 = vmatpush.msra.mxu0 %v221
    %1105 = vmatpush.msra.mxu0 %v217
    %1106 = vmatpush.msra.mxu0 %v213
    %1107 = vmatpush.msra.mxu0 %v209
    %1108 = vmatpush.msra.mxu0 %v205
    %1109 = vmatpush.msra.mxu0 %v201
    %1110 = vmatpush.msra.mxu0 %v197
    %1111 = vmatpush.msra.mxu0 %v193
    %1112 = vmatpush.msra.mxu0 %v189
    %1113 = vmatpush.msra.mxu0 %v185
    %1114 = vmatmul.f32.gmra.mxu0 %v1037
    %v1115 = vpop.f32.mrf.mxu0
    %v1116 = vadd.f32 0.0, %v1115
    %1117 = vdwg.mxu0
    %v1122 = vrot.slane %v1056, 6
    %v1123 = vrot.slane %v1076, 6
    %v1124 = vrot.slane %v1096, 6
    %v1125 = vrot.slane %v1116, 6
    %v1130 = vadd.f32 %v111, %v1122
    %v1131 = vadd.f32 %v134, %v1123
    %v1132 = vadd.f32 %v157, %v1124
    %v1133 = vadd.f32 %v180, %v1125
    %v1134 = vxor.u32 %v1130, 2147483648
    %v1135 = vmul.f32 %v1134, 1.442695
    %v1136 = vpow.pop %v1135
    %v1137 = vadd.f32 %v1136, 1.0
    %v1138 = vrcp.pop %v1137
    %v1139 = vmul.f32 %v1137, %v1138
    %v1140 = vsub.f32 1.0, %v1139
    %v1141 = vmul.f32 %v1138, %v1140
    %v1142 = vadd.f32 %v1138, %v1141
    %vm1143 = vweird.f32 %v1137
    %vm1144 = vweird.f32 %v1138
    %vm1145 = vmor %vm1143, %vm1144
    %v1146 = vsel %vm1145, %v1138, %v1142
    %v1147 = vand.u32 2147483647, %v1137
    %vm1148 = vcmp.eq.f32.partialorder %v1147, 8.507059e+37
    %v1149 = vand.u32 %v1137, 2147483648
    %v1150 = vor.u32 1.1754944e-38, %v1149
    %v1151 = vsel %vm1148, %v1150, %v1146
    %v1152 = vmul.f32 1.0, %v1151
    %v1153 = vxor.u32 %v1131, 2147483648
    %v1154 = vmul.f32 %v1153, 1.442695
    %v1155 = vpow.pop %v1154
    %v1156 = vadd.f32 %v1155, 1.0
    %v1157 = vrcp.pop %v1156
    %v1158 = vmul.f32 %v1156, %v1157
    %v1159 = vsub.f32 1.0, %v1158
    %v1160 = vmul.f32 %v1157, %v1159
    %v1161 = vadd.f32 %v1157, %v1160
    %vm1162 = vweird.f32 %v1156
    %vm1163 = vweird.f32 %v1157
    %vm1164 = vmor %vm1162, %vm1163
    %v1165 = vsel %vm1164, %v1157, %v1161
    %v1166 = vand.u32 2147483647, %v1156
    %vm1167 = vcmp.eq.f32.partialorder %v1166, 8.507059e+37
    %v1168 = vand.u32 %v1156, 2147483648
    %v1169 = vor.u32 1.1754944e-38, %v1168
    %v1170 = vsel %vm1167, %v1169, %v1165
    %v1171 = vmul.f32 1.0, %v1170
    %v1172 = vtanh.pop %v1132
    %v1173 = vxor.u32 %v1133, 2147483648
    %v1174 = vmul.f32 %v1173, 1.442695
    %v1175 = vpow.pop %v1174
    %v1176 = vadd.f32 %v1175, 1.0
    %v1177 = vrcp.pop %v1176
    %v1178 = vmul.f32 %v1176, %v1177
    %v1179 = vsub.f32 1.0, %v1178
    %v1180 = vmul.f32 %v1177, %v1179
    %v1181 = vadd.f32 %v1177, %v1180
    %vm1182 = vweird.f32 %v1176
    %vm1183 = vweird.f32 %v1177
    %vm1184 = vmor %vm1182, %vm1183
    %v1185 = vsel %vm1184, %v1177, %v1181
    %v1186 = vand.u32 2147483647, %v1176
    %vm1187 = vcmp.eq.f32.partialorder %v1186, 8.507059e+37
    %v1188 = vand.u32 %v1176, 2147483648
    %v1189 = vor.u32 1.1754944e-38, %v1188
    %v1190 = vsel %vm1187, %v1189, %v1185
    %v1191 = vmul.f32 1.0, %v1190
    %v1193 = vrot.slane %v1035, 6
    %v1195 = vmul.f32 %v1171, %v1193
    %v1196 = vmul.f32 %v1152, %v1172
    %v1197 = vadd.f32 %v1195, %v1196
    %v1198 = vtanh.pop %v1197
    %v1199 = vmul.f32 %v1191, %v1198
    %v1201 = vrot.slane %v1199, 2
    %1203 = vmatpush.msra.mxu0 %v242
    %1204 = vmatpush.msra.mxu0 %v238
    %1205 = vmatpush.msra.mxu0 %v234
    %1206 = vmatpush.msra.mxu0 %v230
    %1207 = vmatpush.msra.mxu0 %v226
    %1208 = vmatpush.msra.mxu0 %v222
    %1209 = vmatpush.msra.mxu0 %v218
    %1210 = vmatpush.msra.mxu0 %v214
    %1211 = vmatpush.msra.mxu0 %v210
    %1212 = vmatpush.msra.mxu0 %v206
    %1213 = vmatpush.msra.mxu0 %v202
    %1214 = vmatpush.msra.mxu0 %v198
    %1215 = vmatpush.msra.mxu0 %v194
    %1216 = vmatpush.msra.mxu0 %v190
    %1217 = vmatpush.msra.mxu0 %v186
    %1218 = vmatpush.msra.mxu0 %v182
    %1219 = vmatmul.f32.gmra.mxu0 %v1201
    %v1220 = vpop.f32.mrf.mxu0
    %v1221 = vadd.f32 0.0, %v1220
    %1222 = vdwg.mxu0
    %1223 = vmatpush.msra.mxu0 %v243
    %1224 = vmatpush.msra.mxu0 %v239
    %1225 = vmatpush.msra.mxu0 %v235
    %1226 = vmatpush.msra.mxu0 %v231
    %1227 = vmatpush.msra.mxu0 %v227
    %1228 = vmatpush.msra.mxu0 %v223
    %1229 = vmatpush.msra.mxu0 %v219
    %1230 = vmatpush.msra.mxu0 %v215
    %1231 = vmatpush.msra.mxu0 %v211
    %1232 = vmatpush.msra.mxu0 %v207
    %1233 = vmatpush.msra.mxu0 %v203
    %1234 = vmatpush.msra.mxu0 %v199
    %1235 = vmatpush.msra.mxu0 %v195
    %1236 = vmatpush.msra.mxu0 %v191
    %1237 = vmatpush.msra.mxu0 %v187
    %1238 = vmatpush.msra.mxu0 %v183
    %1239 = vmatmul.f32.gmra.mxu0 %v1201
    %v1240 = vpop.f32.mrf.mxu0
    %v1241 = vadd.f32 0.0, %v1240
    %1242 = vdwg.mxu0
    %1243 = vmatpush.msra.mxu0 %v244
    %1244 = vmatpush.msra.mxu0 %v240
    %1245 = vmatpush.msra.mxu0 %v236
    %1246 = vmatpush.msra.mxu0 %v232
    %1247 = vmatpush.msra.mxu0 %v228
    %1248 = vmatpush.msra.mxu0 %v224
    %1249 = vmatpush.msra.mxu0 %v220
    %1250 = vmatpush.msra.mxu0 %v216
    %1251 = vmatpush.msra.mxu0 %v212
    %1252 = vmatpush.msra.mxu0 %v208
    %1253 = vmatpush.msra.mxu0 %v204
    %1254 = vmatpush.msra.mxu0 %v200
    %1255 = vmatpush.msra.mxu0 %v196
    %1256 = vmatpush.msra.mxu0 %v192
    %1257 = vmatpush.msra.mxu0 %v188
    %1258 = vmatpush.msra.mxu0 %v184
    %1259 = vmatmul.f32.gmra.mxu0 %v1201
    %v1260 = vpop.f32.mrf.mxu0
    %v1261 = vadd.f32 0.0, %v1260
    %1262 = vdwg.mxu0
    %1263 = vmatpush.msra.mxu0 %v245
    %1264 = vmatpush.msra.mxu0 %v241
    %1265 = vmatpush.msra.mxu0 %v237
    %1266 = vmatpush.msra.mxu0 %v233
    %1267 = vmatpush.msra.mxu0 %v229
    %1268 = vmatpush.msra.mxu0 %v225
    %1269 = vmatpush.msra.mxu0 %v221
    %1270 = vmatpush.msra.mxu0 %v217
    %1271 = vmatpush.msra.mxu0 %v213
    %1272 = vmatpush.msra.mxu0 %v209
    %1273 = vmatpush.msra.mxu0 %v205
    %1274 = vmatpush.msra.mxu0 %v201
    %1275 = vmatpush.msra.mxu0 %v197
    %1276 = vmatpush.msra.mxu0 %v193
    %1277 = vmatpush.msra.mxu0 %v189
    %1278 = vmatpush.msra.mxu0 %v185
    %1279 = vmatmul.f32.gmra.mxu0 %v1201
    %v1280 = vpop.f32.mrf.mxu0
    %v1281 = vadd.f32 0.0, %v1280
    %1282 = vdwg.mxu0
    %v1287 = vrot.slane %v1221, 4
    %v1288 = vrot.slane %v1241, 4
    %v1289 = vrot.slane %v1261, 4
    %v1290 = vrot.slane %v1281, 4
    %v1295 = vadd.f32 %v111, %v1287
    %v1296 = vadd.f32 %v134, %v1288
    %v1297 = vadd.f32 %v157, %v1289
    %v1298 = vadd.f32 %v180, %v1290
    %v1299 = vxor.u32 %v1295, 2147483648
    %v1300 = vmul.f32 %v1299, 1.442695
    %v1301 = vpow.pop %v1300
    %v1302 = vadd.f32 %v1301, 1.0
    %v1303 = vrcp.pop %v1302
    %v1304 = vmul.f32 %v1302, %v1303
    %v1305 = vsub.f32 1.0, %v1304
    %v1306 = vmul.f32 %v1303, %v1305
    %v1307 = vadd.f32 %v1303, %v1306
    %vm1308 = vweird.f32 %v1302
    %vm1309 = vweird.f32 %v1303
    %vm1310 = vmor %vm1308, %vm1309
    %v1311 = vsel %vm1310, %v1303, %v1307
    %v1312 = vand.u32 2147483647, %v1302
    %vm1313 = vcmp.eq.f32.partialorder %v1312, 8.507059e+37
    %v1314 = vand.u32 %v1302, 2147483648
    %v1315 = vor.u32 1.1754944e-38, %v1314
    %v1316 = vsel %vm1313, %v1315, %v1311
    %v1317 = vmul.f32 1.0, %v1316
    %v1318 = vxor.u32 %v1296, 2147483648
    %v1319 = vmul.f32 %v1318, 1.442695
    %v1320 = vpow.pop %v1319
    %v1321 = vadd.f32 %v1320, 1.0
    %v1322 = vrcp.pop %v1321
    %v1323 = vmul.f32 %v1321, %v1322
    %v1324 = vsub.f32 1.0, %v1323
    %v1325 = vmul.f32 %v1322, %v1324
    %v1326 = vadd.f32 %v1322, %v1325
    %vm1327 = vweird.f32 %v1321
    %vm1328 = vweird.f32 %v1322
    %vm1329 = vmor %vm1327, %vm1328
    %v1330 = vsel %vm1329, %v1322, %v1326
    %v1331 = vand.u32 2147483647, %v1321
    %vm1332 = vcmp.eq.f32.partialorder %v1331, 8.507059e+37
    %v1333 = vand.u32 %v1321, 2147483648
    %v1334 = vor.u32 1.1754944e-38, %v1333
    %v1335 = vsel %vm1332, %v1334, %v1330
    %v1336 = vmul.f32 1.0, %v1335
    %v1337 = vtanh.pop %v1297
    %v1338 = vxor.u32 %v1298, 2147483648
    %v1339 = vmul.f32 %v1338, 1.442695
    %v1340 = vpow.pop %v1339
    %v1341 = vadd.f32 %v1340, 1.0
    %v1342 = vrcp.pop %v1341
    %v1343 = vmul.f32 %v1341, %v1342
    %v1344 = vsub.f32 1.0, %v1343
    %v1345 = vmul.f32 %v1342, %v1344
    %v1346 = vadd.f32 %v1342, %v1345
    %vm1347 = vweird.f32 %v1341
    %vm1348 = vweird.f32 %v1342
    %vm1349 = vmor %vm1347, %vm1348
    %v1350 = vsel %vm1349, %v1342, %v1346
    %v1351 = vand.u32 2147483647, %v1341
    %vm1352 = vcmp.eq.f32.partialorder %v1351, 8.507059e+37
    %v1353 = vand.u32 %v1341, 2147483648
    %v1354 = vor.u32 1.1754944e-38, %v1353
    %v1355 = vsel %vm1352, %v1354, %v1350
    %v1356 = vmul.f32 1.0, %v1355
    %v1358 = vrot.slane %v1197, 6
    %v1360 = vmul.f32 %v1336, %v1358
    %v1361 = vmul.f32 %v1317, %v1337
    %v1362 = vadd.f32 %v1360, %v1361
    %v1363 = vtanh.pop %v1362
    %v1364 = vmul.f32 %v1356, %v1363
    %v1366 = vrot.slane %v1364, 4
    %1368 = vmatpush.msra.mxu0 %v242
    %1369 = vmatpush.msra.mxu0 %v238
    %1370 = vmatpush.msra.mxu0 %v234
    %1371 = vmatpush.msra.mxu0 %v230
    %1372 = vmatpush.msra.mxu0 %v226
    %1373 = vmatpush.msra.mxu0 %v222
    %1374 = vmatpush.msra.mxu0 %v218
    %1375 = vmatpush.msra.mxu0 %v214
    %1376 = vmatpush.msra.mxu0 %v210
    %1377 = vmatpush.msra.mxu0 %v206
    %1378 = vmatpush.msra.mxu0 %v202
    %1379 = vmatpush.msra.mxu0 %v198
    %1380 = vmatpush.msra.mxu0 %v194
    %1381 = vmatpush.msra.mxu0 %v190
    %1382 = vmatpush.msra.mxu0 %v186
    %1383 = vmatpush.msra.mxu0 %v182
    %1384 = vmatmul.f32.gmra.mxu0 %v1366
    %v1385 = vpop.f32.mrf.mxu0
    %v1386 = vadd.f32 0.0, %v1385
    %1387 = vdwg.mxu0
    %1388 = vmatpush.msra.mxu0 %v243
    %1389 = vmatpush.msra.mxu0 %v239
    %1390 = vmatpush.msra.mxu0 %v235
    %1391 = vmatpush.msra.mxu0 %v231
    %1392 = vmatpush.msra.mxu0 %v227
    %1393 = vmatpush.msra.mxu0 %v223
    %1394 = vmatpush.msra.mxu0 %v219
    %1395 = vmatpush.msra.mxu0 %v215
    %1396 = vmatpush.msra.mxu0 %v211
    %1397 = vmatpush.msra.mxu0 %v207
    %1398 = vmatpush.msra.mxu0 %v203
    %1399 = vmatpush.msra.mxu0 %v199
    %1400 = vmatpush.msra.mxu0 %v195
    %1401 = vmatpush.msra.mxu0 %v191
    %1402 = vmatpush.msra.mxu0 %v187
    %1403 = vmatpush.msra.mxu0 %v183
    %1404 = vmatmul.f32.gmra.mxu0 %v1366
    %v1405 = vpop.f32.mrf.mxu0
    %v1406 = vadd.f32 0.0, %v1405
    %1407 = vdwg.mxu0
    %1408 = vmatpush.msra.mxu0 %v244
    %1409 = vmatpush.msra.mxu0 %v240
    %1410 = vmatpush.msra.mxu0 %v236
    %1411 = vmatpush.msra.mxu0 %v232
    %1412 = vmatpush.msra.mxu0 %v228
    %1413 = vmatpush.msra.mxu0 %v224
    %1414 = vmatpush.msra.mxu0 %v220
    %1415 = vmatpush.msra.mxu0 %v216
    %1416 = vmatpush.msra.mxu0 %v212
    %1417 = vmatpush.msra.mxu0 %v208
    %1418 = vmatpush.msra.mxu0 %v204
    %1419 = vmatpush.msra.mxu0 %v200
    %1420 = vmatpush.msra.mxu0 %v196
    %1421 = vmatpush.msra.mxu0 %v192
    %1422 = vmatpush.msra.mxu0 %v188
    %1423 = vmatpush.msra.mxu0 %v184
    %1424 = vmatmul.f32.gmra.mxu0 %v1366
    %v1425 = vpop.f32.mrf.mxu0
    %v1426 = vadd.f32 0.0, %v1425
    %1427 = vdwg.mxu0
    %1428 = vmatpush.msra.mxu0 %v245
    %1429 = vmatpush.msra.mxu0 %v241
    %1430 = vmatpush.msra.mxu0 %v237
    %1431 = vmatpush.msra.mxu0 %v233
    %1432 = vmatpush.msra.mxu0 %v229
    %1433 = vmatpush.msra.mxu0 %v225
    %1434 = vmatpush.msra.mxu0 %v221
    %1435 = vmatpush.msra.mxu0 %v217
    %1436 = vmatpush.msra.mxu0 %v213
    %1437 = vmatpush.msra.mxu0 %v209
    %1438 = vmatpush.msra.mxu0 %v205
    %1439 = vmatpush.msra.mxu0 %v201
    %1440 = vmatpush.msra.mxu0 %v197
    %1441 = vmatpush.msra.mxu0 %v193
    %1442 = vmatpush.msra.mxu0 %v189
    %1443 = vmatpush.msra.mxu0 %v185
    %1444 = vmatmul.f32.gmra.mxu0 %v1366
    %v1445 = vpop.f32.mrf.mxu0
    %v1446 = vadd.f32 0.0, %v1445
    %1447 = vdwg.mxu0
    %v1452 = vrot.slane %v1386, 2
    %v1453 = vrot.slane %v1406, 2
    %v1454 = vrot.slane %v1426, 2
    %v1455 = vrot.slane %v1446, 2
    %v1460 = vadd.f32 %v111, %v1452
    %v1461 = vadd.f32 %v134, %v1453
    %v1462 = vadd.f32 %v157, %v1454
    %v1463 = vadd.f32 %v180, %v1455
    %v1464 = vxor.u32 %v1460, 2147483648
    %v1465 = vmul.f32 %v1464, 1.442695
    %v1466 = vpow.pop %v1465
    %v1467 = vadd.f32 %v1466, 1.0
    %v1468 = vrcp.pop %v1467
    %v1469 = vmul.f32 %v1467, %v1468
    %v1470 = vsub.f32 1.0, %v1469
    %v1471 = vmul.f32 %v1468, %v1470
    %v1472 = vadd.f32 %v1468, %v1471
    %vm1473 = vweird.f32 %v1467
    %vm1474 = vweird.f32 %v1468
    %vm1475 = vmor %vm1473, %vm1474
    %v1476 = vsel %vm1475, %v1468, %v1472
    %v1477 = vand.u32 2147483647, %v1467
    %vm1478 = vcmp.eq.f32.partialorder %v1477, 8.507059e+37
    %v1479 = vand.u32 %v1467, 2147483648
    %v1480 = vor.u32 1.1754944e-38, %v1479
    %v1481 = vsel %vm1478, %v1480, %v1476
    %v1482 = vmul.f32 1.0, %v1481
    %v1483 = vxor.u32 %v1461, 2147483648
    %v1484 = vmul.f32 %v1483, 1.442695
    %v1485 = vpow.pop %v1484
    %v1486 = vadd.f32 %v1485, 1.0
    %v1487 = vrcp.pop %v1486
    %v1488 = vmul.f32 %v1486, %v1487
    %v1489 = vsub.f32 1.0, %v1488
    %v1490 = vmul.f32 %v1487, %v1489
    %v1491 = vadd.f32 %v1487, %v1490
    %vm1492 = vweird.f32 %v1486
    %vm1493 = vweird.f32 %v1487
    %vm1494 = vmor %vm1492, %vm1493
    %v1495 = vsel %vm1494, %v1487, %v1491
    %v1496 = vand.u32 2147483647, %v1486
    %vm1497 = vcmp.eq.f32.partialorder %v1496, 8.507059e+37
    %v1498 = vand.u32 %v1486, 2147483648
    %v1499 = vor.u32 1.1754944e-38, %v1498
    %v1500 = vsel %vm1497, %v1499, %v1495
    %v1501 = vmul.f32 1.0, %v1500
    %v1502 = vtanh.pop %v1462
    %v1503 = vxor.u32 %v1463, 2147483648
    %v1504 = vmul.f32 %v1503, 1.442695
    %v1505 = vpow.pop %v1504
    %v1506 = vadd.f32 %v1505, 1.0
    %v1507 = vrcp.pop %v1506
    %v1508 = vmul.f32 %v1506, %v1507
    %v1509 = vsub.f32 1.0, %v1508
    %v1510 = vmul.f32 %v1507, %v1509
    %v1511 = vadd.f32 %v1507, %v1510
    %vm1512 = vweird.f32 %v1506
    %vm1513 = vweird.f32 %v1507
    %vm1514 = vmor %vm1512, %vm1513
    %v1515 = vsel %vm1514, %v1507, %v1511
    %v1516 = vand.u32 2147483647, %v1506
    %vm1517 = vcmp.eq.f32.partialorder %v1516, 8.507059e+37
    %v1518 = vand.u32 %v1506, 2147483648
    %v1519 = vor.u32 1.1754944e-38, %v1518
    %v1520 = vsel %vm1517, %v1519, %v1515
    %v1521 = vmul.f32 1.0, %v1520
    %v1523 = vrot.slane %v1362, 6
    %v1525 = vmul.f32 %v1501, %v1523
    %v1526 = vmul.f32 %v1482, %v1502
    %v1527 = vadd.f32 %v1525, %v1526
    %v1528 = vtanh.pop %v1527
    %v1529 = vmul.f32 %v1521, %v1528
    %v1530 = vld [vmem:[#allocation5] sm:$0xff]
    %v1531 = vld [vmem:[#allocation5 + $0x8] sm:$0xff]
    %v1532 = vld [vmem:[#allocation5 + $0x10] sm:$0xff]
    %v1533 = vld [vmem:[#allocation5 + $0x18] sm:$0xff]
    %v1534 = vld [vmem:[#allocation5 + $0x20] sm:$0xff]
    %v1535 = vld [vmem:[#allocation5 + $0x28] sm:$0xff]
    %v1536 = vld [vmem:[#allocation5 + $0x30] sm:$0xff]
    %v1537 = vld [vmem:[#allocation5 + $0x38] sm:$0xff]
    %v1538 = vld [vmem:[#allocation5 + $0x40] sm:$0xff]
    %v1539 = vld [vmem:[#allocation5 + $0x48] sm:$0xff]
    %v1540 = vld [vmem:[#allocation5 + $0x50] sm:$0xff]
    %v1541 = vld [vmem:[#allocation5 + $0x58] sm:$0xff]
    %v1542 = vld [vmem:[#allocation5 + $0x60] sm:$0xff]
    %v1543 = vld [vmem:[#allocation5 + $0x68] sm:$0xff]
    %v1544 = vld [vmem:[#allocation5 + $0x70] sm:$0xff]
    %v1545 = vld [vmem:[#allocation5 + $0x78] sm:$0xff]
    %v1546 = vld [vmem:[%s5] sm:$0x1]
    %v1548 = vperm.slane %v1546, 0
    %v1551 = vrot.slane %v1529, 6
    %1553 = vmatpush.msra.mxu0 %v1545
    %1554 = vmatpush.msra.mxu0 %v1544
    %1555 = vmatpush.msra.mxu0 %v1543
    %1556 = vmatpush.msra.mxu0 %v1542
    %1557 = vmatpush.msra.mxu0 %v1541
    %1558 = vmatpush.msra.mxu0 %v1540
    %1559 = vmatpush.msra.mxu0 %v1539
    %1560 = vmatpush.msra.mxu0 %v1538
    %1561 = vmatpush.msra.mxu0 %v1537
    %1562 = vmatpush.msra.mxu0 %v1536
    %1563 = vmatpush.msra.mxu0 %v1535
    %1564 = vmatpush.msra.mxu0 %v1534
    %1565 = vmatpush.msra.mxu0 %v1533
    %1566 = vmatpush.msra.mxu0 %v1532
    %1567 = vmatpush.msra.mxu0 %v1531
    %1568 = vmatpush.msra.mxu0 %v1530
    %1569 = vmatmul.f32.gmra.mxu0 %v1551
    %v1570 = vpop.f32.mrf.mxu0
    %v1571 = vadd.f32 %v1548, %v1570
    %1572 = vdwg.mxu0
    %1573 = vst [vmem:[#allocation7] sm:$0x3] %v1571
    // Predicated region
    $region34: #{tpu_custom_call.1} parent=1 // pred_check
      _
    $region35: #{tpu_custom_call.1} parent=1 // pred_check_branch
      %1575 = sbr.rel (0) target = $region37
    $region36: #{tpu_custom_call.1} parent=1 // pred_region
      %1577 = vsyncadd [#allocation4], 0
      %s1579 = sshll.u32 [#allocation7], 4
      %s1580 = int_to_ptr.vmem [resolvable:$true] %s1579
      %s1581 = sshll.u32 %s6, 4
      %s1582 = int_to_ptr.hbm [resolvable:$true] %s1581
      %1584 = dma.vmem_to_hbm [thread:$0]  %s1580, 32, %s1582, [#allocation4]
    $region37: #{tpu_custom_call.1} parent=1 // pred_fallthru
      _
    // Predicated region
    $region38: #{tpu_custom_call.1} parent=1 // pred_check
      _
    $region39: #{tpu_custom_call.1} parent=1 // pred_check_branch
      %1586 = sbr.rel (0) target = $region41
    $region40: #{tpu_custom_call.1} parent=1 // pred_region
      %1588 = dma.done [#allocation4], 32
    $region41: #{tpu_custom_call.1} parent=1 // pred_fallthru
      _
    %1589 = vsyncpa [#allocation3], 1
    %1590 = vsyncpa [#allocation6], 1
    %1591 = vsyncpa [#allocation4], 1

</llo_original>
